<compile_context>
chip_gen: v7x
topology: tpu7x:2x2x1
jax: 0.10.0
libtpu: 0.0.40
codegen_flags: <defaults>
</compile_context>

<pallas_src>
import functools

import jax
import jax.numpy as jnp
from jax import lax
from jax.experimental import pallas as pl
from jax.experimental.pallas import tpu as pltpu


def _round_up(x, m):
    return (x + m - 1) // m * m


def _cdiv(a, b):
    return (a + b - 1) // b


def _vmem_capacity_bytes():
    """Physical per-core VMEM; conservative fallback if the query fails."""
    try:
        info = pltpu.get_tpu_info()
        cap = getattr(info, "vmem_capacity_bytes", None)
        if cap:
            return int(cap)
    except Exception:
        pass
    return 64 * 1024 * 1024  # v7x per-TensorCore VMEM (most restrictive)


# ----------------------------- conv kernel ----------------------------------


def _conv_down_kernel(xm_ref, xh_ref, w01_ref, w2_ref, b_ref, o_ref, acc_ref,
                      *, TH, Wop, Cin, Cop, w2_full_k):
    """One (batch, output-row-tile) step of the stride-2 3x3 conv.

    xm_ref : (1, TH, 2, Wop+1, 2*Cin) padded-input row pairs [t*TH, t*TH+TH);
             lanes = (col-parity, Cin).
    xh_ref : (1, 1, 2, Wop+1, 2*Cin)  halo row pair t*TH + TH.
    w01_ref: (3, 2*Cin, Cop)          taps kw=0,1 stacked along K.
    w2_ref : (3, K2, Cop)             tap  kw=2 (K2 = 2*Cin zero-padded, or Cin).
    b_ref  : (1, Cop)                 f32 bias.
    o_ref  : (1, TH, Wop, Cop)
    acc_ref: (TH*Wop, Cop)            f32 scratch accumulator.
    """
    M = TH * Wop
    Cin2 = 2 * Cin

    # Bias-initialized accumulator (replaces zeros-init + separate bias add).
    acc_ref[...] = jnp.broadcast_to(b_ref[...].astype(jnp.float32), (M, Cop))

    def taps(xk, kh, r0, nrows):
        # xk: (nrows, Wop+1, 2*Cin) row slab for kernel row kh.
        mr = nrows * Wop
        # kw = 0,1: aligned column pairs, one MXU push with K = 2*Cin.
        xa = xk[:, :Wop, :].reshape(mr, Cin2)
        acc_ref[r0:r0 + mr, :] += jnp.dot(
            xa, w01_ref[kh], preferred_element_type=jnp.float32)
        # kw = 2: next column pair.  Full-lane slab with zero-padded K when
        # Cin is not 128-aligned (avoids an unaligned lane-slice re-layout).
        if w2_full_k:
            xb = xk[:, 1:Wop + 1, :].reshape(mr, Cin2)
        else:
            xb = xk[:, 1:Wop + 1, :Cin].reshape(mr, Cin)
        acc_ref[r0:r0 + mr, :] += jnp.dot(
            xb, w2_ref[kh], preferred_element_type=jnp.float32)

    # kh = 0, 1: row-pair i (parity 0 / 1) aligns with output row i.
    taps(xm_ref[0, :, 0, :, :], 0, 0, TH)
    taps(xm_ref[0, :, 1, :, :], 1, 0, TH)
    # kh = 2: row-pair i+1, parity 0 — shifted down one output row.  No
    # concatenated copy: main rows and halo row hit disjoint acc slices.
    if TH > 1:
        taps(xm_ref[0, pl.ds(1, TH - 1), 0, :, :], 2, 0, TH - 1)
    taps(xh_ref[0, :, 0, :, :], 2, (TH - 1) * Wop, 1)

    o_ref[0] = acc_ref[...].reshape(TH, Wop, Cop).astype(o_ref.dtype)


def conv_downsample(x_nchw, weight_oihw, bias, *, compute_dtype=jnp.bfloat16):
    """Equivalent of nn.Conv2d(in_ch, out_ch, 3, stride=2, padding=1)."""
    N, Cin, H, W = x_nchw.shape
    Cout = weight_oihw.shape[0]
    Ho = (H - 1) // 2 + 1
    Wo = (W - 1) // 2 + 1

    out_dtype = x_nchw.dtype
    cdt = out_dtype if compute_dtype is None else jnp.dtype(compute_dtype)
    eb = jnp.dtype(cdt).itemsize
    eo = jnp.dtype(out_dtype).itemsize

    Cop = _round_up(Cout, 128)      # lane-dense (unmasked) output stores
    Wop = _round_up(Wo, 8)          # free (TH, Wop) <-> (TH*Wop) merges
    w2_full_k = (Cin % 128) != 0    # keep :Cin lane slice only when aligned
    K2 = 2 * Cin if w2_full_k else Cin

    # ---- generation-aware VMEM budget & row-tile selection ------------------
    vmem_limit = min(int(_vmem_capacity_bytes() * 3 // 4), 100 * 1024 * 1024)
    w_bytes = 2 * (3 * 2 * Cin * Cop + 3 * K2 * Cop + Cop) * eb  # dbl-buffered
    halo_bytes = 2 * (2 * (Wop + 1) * 2 * Cin) * eb
    fixed = w_bytes + halo_bytes + (4 << 20)                     # + margin
    per_row = (2 * 2 * (Wop + 1) * 2 * Cin * eb   # main input tile (x2 buf)
               + 2 * Wop * Cop * eo               # output tile (x2 buf)
               + Wop * Cop * 4                    # f32 scratch accumulator
               + Wop * Cop * 4                    # MXU-result / add temp
               + 2 * Wop * 2 * Cin * eb)          # xa / xb re-layout copies
    budget = max(vmem_limit - fixed, per_row)
    th_max = int(max(1, min(Ho, 512, budget // max(per_row, 1))))
    n_tiles = _cdiv(Ho, th_max)
    if N == 1 and n_tiles == 1 and Ho >= 2:
        n_tiles = 2                               # feed both v7x TensorCores
    TH = _cdiv(Ho, n_tiles)                       # balanced tiles, min waste
    n_tiles = _cdiv(Ho, TH)
    Ho_pad = TH * n_tiles

    # ---- layout: pad + channels-last; fold column parity into lanes --------
    Hp = 2 * Ho_pad + 2
    Wp = 2 * (Wop + 1)
    x = jnp.transpose(x_nchw, (0, 2, 3, 1)).astype(cdt)         # NCHW -> NHWC
    xp = jnp.pad(x, ((0, 0), (1, Hp - 1 - H), (1, Wp - 1 - W), (0, 0)))
    xm = xp.reshape(N, Ho_pad + 1, 2, Wop + 1, 2 * Cin)         # free reshape

    # Weights: (kh, kw, Cin, Cout); kw=0,1 stacked along K, kw=2 separate.
    w_hwio = jnp.transpose(weight_oihw, (2, 3, 1, 0)).astype(cdt)
    w01 = jnp.concatenate([w_hwio[:, 0], w_hwio[:, 1]], axis=1)   # (3,2Cin,Co)
    w2k = w_hwio[:, 2]                                            # (3,Cin,Co)
    if w2_full_k:
        w2k = jnp.concatenate([w2k, jnp.zeros_like(w2k)], axis=1)  # zero odd K
    if Cop != Cout:
        w01 = jnp.pad(w01, ((0, 0), (0, 0), (0, Cop - Cout)))
        w2k = jnp.pad(w2k, ((0, 0), (0, 0), (0, Cop - Cout)))
        b2 = jnp.pad(bias, (0, Cop - Cout))
    else:
        b2 = bias
    b2 = b2.reshape(1, Cop).astype(jnp.float32)

    kernel = functools.partial(_conv_down_kernel, TH=TH, Wop=Wop, Cin=Cin,
                               Cop=Cop, w2_full_k=w2_full_k)
    out = pl.pallas_call(
        kernel,
        out_shape=jax.ShapeDtypeStruct((N, Ho_pad, Wop, Cop), out_dtype),
        grid=(N, n_tiles),
        in_specs=[
            pl.BlockSpec((1, TH, 2, Wop + 1, 2 * Cin),
                         lambda n, t: (n, t, 0, 0, 0)),
            pl.BlockSpec((1, 1, 2, Wop + 1, 2 * Cin),
                         lambda n, t: (n, (t + 1) * TH, 0, 0, 0)),
            pl.BlockSpec((3, 2 * Cin, Cop), lambda n, t: (0, 0, 0)),
            pl.BlockSpec((3, K2, Cop), lambda n, t: (0, 0, 0)),
            pl.BlockSpec((1, Cop), lambda n, t: (0, 0)),
        ],
        out_specs=pl.BlockSpec((1, TH, Wop, Cop), lambda n, t: (n, t, 0, 0)),
        scratch_shapes=[pltpu.VMEM((TH * Wop, Cop), jnp.float32)],
        compiler_params=pltpu.CompilerParams(
            dimension_semantics=("parallel", "parallel"),
            vmem_limit_bytes=int(vmem_limit)),
    )(xm, xm, w01, w2k, b2)

    out = out[:, :Ho, :Wo, :Cout]
    return jnp.transpose(out, (0, 3, 1, 2))                     # back to NCHW


# ---------------------------- avgpool kernel ---------------------------------


def _avgpool_down_kernel(xm_ref, o_ref, *, C):
    """2x2 average pool, stride 2.  xm_ref: (1, TH, 2, Wo, 2*C)."""
    a = xm_ref[0, :, 0, :, :]                      # even rows, (TH, Wo, 2C)
    b = xm_ref[0, :, 1, :, :]                      # odd rows
    s = (a + b).astype(jnp.float32)
    o_ref[0] = ((s[:, :, :C] + s[:, :, C:]) * 0.25).astype(o_ref.dtype)


def avgpool_downsample(x_nchw):
    """Equivalent of nn.AvgPool2d(2)."""
    N, C, H, W = x_nchw.shape
    Ho, Wo = H // 2, W // 2
    x = jnp.transpose(x_nchw, (0, 2, 3, 1))                     # NCHW -> NHWC
    if (H != 2 * Ho) or (W != 2 * Wo):                          # torch floors
        x = x[:, :2 * Ho, :2 * Wo, :]
    xm = x.reshape(N, Ho, 2, Wo, 2 * C)                         # free reshape

    itemsize = x.dtype.itemsize
    vmem_limit = min(int(_vmem_capacity_bytes() * 3 // 4), 100 * 1024 * 1024)
    per_row = (2 * Wo * 2 * C + Wo * C) * itemsize * 2
    th_max = int(max(1, min(Ho, 512, (vmem_limit // 2) // max(per_row, 1))))
    n_tiles = _cdiv(Ho, th_max)
    if N == 1 and n_tiles == 1 and Ho >= 2:
        n_tiles = 2                                 # feed both v7x TensorCores
    TH = _cdiv(Ho, n_tiles)
    n_tiles = _cdiv(Ho, TH)                         # partial tail tile masked

    out = pl.pallas_call(
        functools.partial(_avgpool_down_kernel, C=C),
        out_shape=jax.ShapeDtypeStruct((N, Ho, Wo, C), x.dtype),
        grid=(N, n_tiles),
        in_specs=[pl.BlockSpec((1, TH, 2, Wo, 2 * C),
                               lambda n, t: (n, t, 0, 0, 0))],
        out_specs=pl.BlockSpec((1, TH, Wo, C), lambda n, t: (n, t, 0, 0)),
        compiler_params=pltpu.CompilerParams(
            dimension_semantics=("parallel", "parallel"),
            vmem_limit_bytes=int(vmem_limit)),
    )(xm)
    return jnp.transpose(out, (0, 3, 1, 2))


_conv_downsample_jit = jax.jit(conv_downsample,
                               static_argnames=("compute_dtype",))
_avgpool_downsample_jit = jax.jit(avgpool_downsample)


# ------------------------------ module ---------------------------------------


class Downsample:
    """JAX/Pallas port of the PyTorch Downsample module (forward only)."""

    def __init__(self, in_ch, out_ch=None, with_conv=True, *, key=None,
                 dtype=jnp.float32, compute_dtype=jnp.bfloat16):
        self.in_ch = in_ch
        self.out_ch = out_ch if out_ch is not None else in_ch
        self.with_conv = with_conv
        self.compute_dtype = compute_dtype          # None -> full f32 compute
        if with_conv:
            if key is None:
                key = jax.random.PRNGKey(0)
            kw_, kb_ = jax.random.split(key)
            fan_in = in_ch * 3 * 3
            bound = 1.0 / (fan_in ** 0.5)
            # deterministic synthetic init (PyTorch-style uniform bounds)
            self.weight = jax.random.uniform(
                kw_, (self.out_ch, in_ch, 3, 3), dtype, -bound, bound)
            self.bias = jax.random.uniform(
                kb_, (self.out_ch,), dtype, -bound, bound)
        else:
            assert in_ch == self.out_ch
            self.weight = None
            self.bias = None

    def __call__(self, x_nchw):
        assert x_nchw.shape[1] == self.in_ch
        if self.with_conv:
            return _conv_downsample_jit(x_nchw, self.weight, self.bias,
                                        compute_dtype=self.compute_dtype)
        return _avgpool_downsample_jit(x_nchw)


# ------------------------------ demo -----------------------------------------


if __name__ == "__main__":
    key = jax.random.PRNGKey(0)
    kx, kp = jax.random.split(key)
    x = jax.random.normal(kx, (2, 4, 16, 16), jnp.float32)   # NCHW, like torch

    # with_conv=True (learned conv downsampling), in_ch=4 -> out_ch=8.
    mod = Downsample(4, 8, with_conv=True, key=kp)           # bf16 MXU compute
    y = jax.block_until_ready(mod(x))
    assert y.shape == (2, 8, 8, 8), y.shape
    # Reference with the same bf16-rounded inputs, f32 accumulation + f32 bias.
    y_ref = lax.conv_general_dilated(
        x.astype(jnp.bfloat16), mod.weight.astype(jnp.bfloat16),
        window_strides=(2, 2), padding=((1, 1), (1, 1)),
        dimension_numbers=("NCHW", "OIHW", "NCHW"),
        preferred_element_type=jnp.float32,
    ) + mod.bias[None, :, None, None]
    assert jnp.allclose(y, y_ref, atol=5e-3, rtol=5e-3), \
        float(jnp.max(jnp.abs(y - y_ref)))

    # f32 opt-out path matches the f32 reference tightly.
    y32 = jax.block_until_ready(
        _conv_downsample_jit(x, mod.weight, mod.bias,
                             compute_dtype=jnp.float32))
    y32_ref = lax.conv_general_dilated(
        x, mod.weight, window_strides=(2, 2), padding=((1, 1), (1, 1)),
        dimension_numbers=("NCHW", "OIHW", "NCHW"),
    ) + mod.bias[None, :, None, None]
    assert jnp.allclose(y32, y32_ref, atol=1e-4, rtol=1e-4), \
        float(jnp.max(jnp.abs(y32 - y32_ref)))

    # with_conv=False (AvgPool2d(2))
    mod2 = Downsample(4, with_conv=False)
    y2 = jax.block_until_ready(mod2(x))
    y2_ref = x.reshape(2, 4, 8, 2, 8, 2).mean(axis=(3, 5))
    assert y2.shape == (2, 4, 8, 8), y2.shape
    assert jnp.allclose(y2, y2_ref, atol=1e-5, rtol=1e-5), "avgpool mismatch"

    print("KERNEL_OK")
</pallas_src>

<mosaic_0001>
module attributes {stable_mosaic.version = 11 : i64} {
  func.func @_conv_down_kernel(%arg0: i32, %arg1: i32, %arg2: memref<1x8x2x9x8xbf16, #tpu.memory_space<vmem>>, %arg3: memref<1x1x2x9x8xbf16, #tpu.memory_space<vmem>>, %arg4: memref<3x8x128xbf16, #tpu.memory_space<vmem>>, %arg5: memref<3x8x128xbf16, #tpu.memory_space<vmem>>, %arg6: memref<1x128xf32, #tpu.memory_space<vmem>>, %arg7: memref<1x8x8x128xf32, #tpu.memory_space<vmem>>, %arg8: memref<64x128xf32, #tpu.memory_space<vmem>>) attributes {dimension_semantics = [#tpu.dimension_semantics<parallel>, #tpu.dimension_semantics<parallel>], iteration_bounds = array<i64: 2, 1>, scalar_prefetch = 0 : i64, scratch_operands = 1 : i64, tpu.core_type = #tpu.core_type<tc>, window_params = [{transform_indices = @transform_0, window_bounds = array<i64: 1, 8, 2, 9, 8>}, {transform_indices = @transform_1, window_bounds = array<i64: 1, 1, 2, 9, 8>}, {pipeline_mode = #tpu.pipeline_mode<synchronous>, transform_indices = @transform_2, window_bounds = array<i64: 3, 8, 128>}, {pipeline_mode = #tpu.pipeline_mode<synchronous>, transform_indices = @transform_3, window_bounds = array<i64: 3, 8, 128>}, {pipeline_mode = #tpu.pipeline_mode<synchronous>, transform_indices = @transform_4, window_bounds = array<i64: 1, 128>}, {transform_indices = @transform_5, window_bounds = array<i64: 1, 8, 8, 128>}]} {
    %c0 = arith.constant 0 : index
    %c0_0 = arith.constant 0 : index
    %0 = vector.load %arg6[%c0, %c0_0] : memref<1x128xf32, #tpu.memory_space<vmem>>, vector<1x128xf32>
    %1 = vector.shape_cast %0 : vector<1x128xf32> to vector<1x128xf32>
    %2 = vector.broadcast %1 : vector<1x128xf32> to vector<64x128xf32>
    %c0_1 = arith.constant 0 : index
    %c0_2 = arith.constant 0 : index
    %3 = vector.load %arg8[%c0_1, %c0_2] : memref<64x128xf32, #tpu.memory_space<vmem>>, vector<64x128xf32>
    tpu.vector_store %arg8[%c0_1, %c0_2], %2 {strides = array<i32>} : memref<64x128xf32, #tpu.memory_space<vmem>>, vector<64x128xf32>,
    %c0_3 = arith.constant 0 : index
    %c0_4 = arith.constant 0 : index
    %c0_5 = arith.constant 0 : index
    %c0_6 = arith.constant 0 : index
    %c0_7 = arith.constant 0 : index
    %4 = vector.load %arg2[%c0_3, %c0_4, %c0_5, %c0_6, %c0_7] : memref<1x8x2x9x8xbf16, #tpu.memory_space<vmem>>, vector<1x8x1x9x8xbf16>
    %5 = vector.shape_cast %4 : vector<1x8x1x9x8xbf16> to vector<8x9x8xbf16>
    %6 = vector.extract_strided_slice %5 {offsets = [0, 0, 0], sizes = [8, 8, 8], strides = [1, 1, 1]} : vector<8x9x8xbf16> to vector<8x8x8xbf16>
    %7 = vector.shape_cast %6 : vector<8x8x8xbf16> to vector<64x8xbf16>
    %c0_8 = arith.constant 0 : index
    %c0_9 = arith.constant 0 : index
    %8 = vector.load %arg8[%c0_8, %c0_9] : memref<64x128xf32, #tpu.memory_space<vmem>>, vector<64x128xf32>
    %c0_10 = arith.constant 0 : index
    %c0_11 = arith.constant 0 : index
    %c0_12 = arith.constant 0 : index
    %9 = vector.load %arg4[%c0_10, %c0_11, %c0_12] : memref<3x8x128xbf16, #tpu.memory_space<vmem>>, vector<1x8x128xbf16>
    %10 = vector.shape_cast %9 : vector<1x8x128xbf16> to vector<8x128xbf16>
    %cst = arith.constant dense<0.000000e+00> : vector<64x128xf32>
    %11 = tpu.matmul %7, %10, %cst {dimension_numbers = #tpu.dot_dimension_numbers<[1], [0], [0], [1], [0, 0, 1, 1], [], []>} : vector<64x8xbf16>, vector<8x128xbf16>, vector<64x128xf32> -> vector<64x128xf32>
    %12 = arith.addf %8, %11 : vector<64x128xf32>
    %c0_13 = arith.constant 0 : index
    %c0_14 = arith.constant 0 : index
    %13 = vector.load %arg8[%c0_13, %c0_14] : memref<64x128xf32, #tpu.memory_space<vmem>>, vector<64x128xf32>
    tpu.vector_store %arg8[%c0_13, %c0_14], %12 {strides = array<i32>} : memref<64x128xf32, #tpu.memory_space<vmem>>, vector<64x128xf32>,
    %14 = vector.extract_strided_slice %5 {offsets = [0, 1, 0], sizes = [8, 8, 8], strides = [1, 1, 1]} : vector<8x9x8xbf16> to vector<8x8x8xbf16>
    %15 = vector.shape_cast %14 : vector<8x8x8xbf16> to vector<64x8xbf16>
    %c0_15 = arith.constant 0 : index
    %c0_16 = arith.constant 0 : index
    %16 = vector.load %arg8[%c0_15, %c0_16] : memref<64x128xf32, #tpu.memory_space<vmem>>, vector<64x128xf32>
    %c0_17 = arith.constant 0 : index
    %c0_18 = arith.constant 0 : index
    %c0_19 = arith.constant 0 : index
    %17 = vector.load %arg5[%c0_17, %c0_18, %c0_19] : memref<3x8x128xbf16, #tpu.memory_space<vmem>>, vector<1x8x128xbf16>
    %18 = vector.shape_cast %17 : vector<1x8x128xbf16> to vector<8x128xbf16>
    %cst_20 = arith.constant dense<0.000000e+00> : vector<64x128xf32>
    %19 = tpu.matmul %15, %18, %cst_20 {dimension_numbers = #tpu.dot_dimension_numbers<[1], [0], [0], [1], [0, 0, 1, 1], [], []>} : vector<64x8xbf16>, vector<8x128xbf16>, vector<64x128xf32> -> vector<64x128xf32>
    %20 = arith.addf %16, %19 : vector<64x128xf32>
    %c0_21 = arith.constant 0 : index
    %c0_22 = arith.constant 0 : index
    %21 = vector.load %arg8[%c0_21, %c0_22] : memref<64x128xf32, #tpu.memory_space<vmem>>, vector<64x128xf32>
    tpu.vector_store %arg8[%c0_21, %c0_22], %20 {strides = array<i32>} : memref<64x128xf32, #tpu.memory_space<vmem>>, vector<64x128xf32>,
    %c0_23 = arith.constant 0 : index
    %c0_24 = arith.constant 0 : index
    %c1 = arith.constant 1 : index
    %c0_25 = arith.constant 0 : index
    %c0_26 = arith.constant 0 : index
    %22 = vector.load %arg2[%c0_23, %c0_24, %c1, %c0_25, %c0_26] : memref<1x8x2x9x8xbf16, #tpu.memory_space<vmem>>, vector<1x8x1x9x8xbf16>
    %23 = vector.shape_cast %22 : vector<1x8x1x9x8xbf16> to vector<8x9x8xbf16>
    %24 = vector.extract_strided_slice %23 {offsets = [0, 0, 0], sizes = [8, 8, 8], strides = [1, 1, 1]} : vector<8x9x8xbf16> to vector<8x8x8xbf16>
    %25 = vector.shape_cast %24 : vector<8x8x8xbf16> to vector<64x8xbf16>
    %c0_27 = arith.constant 0 : index
    %c0_28 = arith.constant 0 : index
    %26 = vector.load %arg8[%c0_27, %c0_28] : memref<64x128xf32, #tpu.memory_space<vmem>>, vector<64x128xf32>
    %c1_29 = arith.constant 1 : index
    %c0_30 = arith.constant 0 : index
    %c0_31 = arith.constant 0 : index
    %27 = vector.load %arg4[%c1_29, %c0_30, %c0_31] : memref<3x8x128xbf16, #tpu.memory_space<vmem>>, vector<1x8x128xbf16>
    %28 = vector.shape_cast %27 : vector<1x8x128xbf16> to vector<8x128xbf16>
    %cst_32 = arith.constant dense<0.000000e+00> : vector<64x128xf32>
    %29 = tpu.matmul %25, %28, %cst_32 {dimension_numbers = #tpu.dot_dimension_numbers<[1], [0], [0], [1], [0, 0, 1, 1], [], []>} : vector<64x8xbf16>, vector<8x128xbf16>, vector<64x128xf32> -> vector<64x128xf32>
    %30 = arith.addf %26, %29 : vector<64x128xf32>
    %c0_33 = arith.constant 0 : index
    %c0_34 = arith.constant 0 : index
    %31 = vector.load %arg8[%c0_33, %c0_34] : memref<64x128xf32, #tpu.memory_space<vmem>>, vector<64x128xf32>
    tpu.vector_store %arg8[%c0_33, %c0_34], %30 {strides = array<i32>} : memref<64x128xf32, #tpu.memory_space<vmem>>, vector<64x128xf32>,
    %32 = vector.extract_strided_slice %23 {offsets = [0, 1, 0], sizes = [8, 8, 8], strides = [1, 1, 1]} : vector<8x9x8xbf16> to vector<8x8x8xbf16>
    %33 = vector.shape_cast %32 : vector<8x8x8xbf16> to vector<64x8xbf16>
    %c0_35 = arith.constant 0 : index
    %c0_36 = arith.constant 0 : index
    %34 = vector.load %arg8[%c0_35, %c0_36] : memref<64x128xf32, #tpu.memory_space<vmem>>, vector<64x128xf32>
    %c1_37 = arith.constant 1 : index
    %c0_38 = arith.constant 0 : index
    %c0_39 = arith.constant 0 : index
    %35 = vector.load %arg5[%c1_37, %c0_38, %c0_39] : memref<3x8x128xbf16, #tpu.memory_space<vmem>>, vector<1x8x128xbf16>
    %36 = vector.shape_cast %35 : vector<1x8x128xbf16> to vector<8x128xbf16>
    %cst_40 = arith.constant dense<0.000000e+00> : vector<64x128xf32>
    %37 = tpu.matmul %33, %36, %cst_40 {dimension_numbers = #tpu.dot_dimension_numbers<[1], [0], [0], [1], [0, 0, 1, 1], [], []>} : vector<64x8xbf16>, vector<8x128xbf16>, vector<64x128xf32> -> vector<64x128xf32>
    %38 = arith.addf %34, %37 : vector<64x128xf32>
    %c0_41 = arith.constant 0 : index
    %c0_42 = arith.constant 0 : index
    %39 = vector.load %arg8[%c0_41, %c0_42] : memref<64x128xf32, #tpu.memory_space<vmem>>, vector<64x128xf32>
    tpu.vector_store %arg8[%c0_41, %c0_42], %38 {strides = array<i32>} : memref<64x128xf32, #tpu.memory_space<vmem>>, vector<64x128xf32>,
    %c0_43 = arith.constant 0 : index
    %c1_44 = arith.constant 1 : index
    %c0_45 = arith.constant 0 : index
    %c0_46 = arith.constant 0 : index
    %c0_47 = arith.constant 0 : index
    %40 = vector.load %arg2[%c0_43, %c1_44, %c0_45, %c0_46, %c0_47] : memref<1x8x2x9x8xbf16, #tpu.memory_space<vmem>>, vector<1x7x1x9x8xbf16>
    %41 = vector.shape_cast %40 : vector<1x7x1x9x8xbf16> to vector<7x9x8xbf16>
    %42 = vector.extract_strided_slice %41 {offsets = [0, 0, 0], sizes = [7, 8, 8], strides = [1, 1, 1]} : vector<7x9x8xbf16> to vector<7x8x8xbf16>
    %43 = vector.shape_cast %42 : vector<7x8x8xbf16> to vector<56x8xbf16>
    %c0_48 = arith.constant 0 : index
    %c0_49 = arith.constant 0 : index
    %44 = vector.load %arg8[%c0_48, %c0_49] : memref<64x128xf32, #tpu.memory_space<vmem>>, vector<56x128xf32>
    %c2 = arith.constant 2 : index
    %c0_50 = arith.constant 0 : index
    %c0_51 = arith.constant 0 : index
    %45 = vector.load %arg4[%c2, %c0_50, %c0_51] : memref<3x8x128xbf16, #tpu.memory_space<vmem>>, vector<1x8x128xbf16>
    %46 = vector.shape_cast %45 : vector<1x8x128xbf16> to vector<8x128xbf16>
    %cst_52 = arith.constant dense<0.000000e+00> : vector<56x128xf32>
    %47 = tpu.matmul %43, %46, %cst_52 {dimension_numbers = #tpu.dot_dimension_numbers<[1], [0], [0], [1], [0, 0, 1, 1], [], []>} : vector<56x8xbf16>, vector<8x128xbf16>, vector<56x128xf32> -> vector<56x128xf32>
    %48 = arith.addf %44, %47 : vector<56x128xf32>
    %c0_53 = arith.constant 0 : index
    %c0_54 = arith.constant 0 : index
    %49 = vector.load %arg8[%c0_53, %c0_54] : memref<64x128xf32, #tpu.memory_space<vmem>>, vector<56x128xf32>
    tpu.vector_store %arg8[%c0_53, %c0_54], %48 {strides = array<i32>} : memref<64x128xf32, #tpu.memory_space<vmem>>, vector<56x128xf32>,
    %50 = vector.extract_strided_slice %41 {offsets = [0, 1, 0], sizes = [7, 8, 8], strides = [1, 1, 1]} : vector<7x9x8xbf16> to vector<7x8x8xbf16>
    %51 = vector.shape_cast %50 : vector<7x8x8xbf16> to vector<56x8xbf16>
    %c0_55 = arith.constant 0 : index
    %c0_56 = arith.constant 0 : index
    %52 = vector.load %arg8[%c0_55, %c0_56] : memref<64x128xf32, #tpu.memory_space<vmem>>, vector<56x128xf32>
    %c2_57 = arith.constant 2 : index
    %c0_58 = arith.constant 0 : index
    %c0_59 = arith.constant 0 : index
    %53 = vector.load %arg5[%c2_57, %c0_58, %c0_59] : memref<3x8x128xbf16, #tpu.memory_space<vmem>>, vector<1x8x128xbf16>
    %54 = vector.shape_cast %53 : vector<1x8x128xbf16> to vector<8x128xbf16>
    %cst_60 = arith.constant dense<0.000000e+00> : vector<56x128xf32>
    %55 = tpu.matmul %51, %54, %cst_60 {dimension_numbers = #tpu.dot_dimension_numbers<[1], [0], [0], [1], [0, 0, 1, 1], [], []>} : vector<56x8xbf16>, vector<8x128xbf16>, vector<56x128xf32> -> vector<56x128xf32>
    %56 = arith.addf %52, %55 : vector<56x128xf32>
    %c0_61 = arith.constant 0 : index
    %c0_62 = arith.constant 0 : index
    %57 = vector.load %arg8[%c0_61, %c0_62] : memref<64x128xf32, #tpu.memory_space<vmem>>, vector<56x128xf32>
    tpu.vector_store %arg8[%c0_61, %c0_62], %56 {strides = array<i32>} : memref<64x128xf32, #tpu.memory_space<vmem>>, vector<56x128xf32>,
    %c0_63 = arith.constant 0 : index
    %c0_64 = arith.constant 0 : index
    %c0_65 = arith.constant 0 : index
    %c0_66 = arith.constant 0 : index
    %c0_67 = arith.constant 0 : index
    %58 = vector.load %arg3[%c0_63, %c0_64, %c0_65, %c0_66, %c0_67] : memref<1x1x2x9x8xbf16, #tpu.memory_space<vmem>>, vector<1x1x1x9x8xbf16>
    %59 = vector.shape_cast %58 : vector<1x1x1x9x8xbf16> to vector<1x9x8xbf16>
    %60 = vector.extract_strided_slice %59 {offsets = [0, 0, 0], sizes = [1, 8, 8], strides = [1, 1, 1]} : vector<1x9x8xbf16> to vector<1x8x8xbf16>
    %61 = vector.shape_cast %60 : vector<1x8x8xbf16> to vector<8x8xbf16>
    %c56 = arith.constant 56 : index
    %c0_68 = arith.constant 0 : index
    %62 = vector.load %arg8[%c56, %c0_68] : memref<64x128xf32, #tpu.memory_space<vmem>>, vector<8x128xf32>
    %c2_69 = arith.constant 2 : index
    %c0_70 = arith.constant 0 : index
    %c0_71 = arith.constant 0 : index
    %63 = vector.load %arg4[%c2_69, %c0_70, %c0_71] : memref<3x8x128xbf16, #tpu.memory_space<vmem>>, vector<1x8x128xbf16>
    %64 = vector.shape_cast %63 : vector<1x8x128xbf16> to vector<8x128xbf16>
    %cst_72 = arith.constant dense<0.000000e+00> : vector<8x128xf32>
    %65 = tpu.matmul %61, %64, %cst_72 {dimension_numbers = #tpu.dot_dimension_numbers<[1], [0], [0], [1], [0, 0, 1, 1], [], []>} : vector<8x8xbf16>, vector<8x128xbf16>, vector<8x128xf32> -> vector<8x128xf32>
    %66 = arith.addf %62, %65 : vector<8x128xf32>
    %c56_73 = arith.constant 56 : index
    %c0_74 = arith.constant 0 : index
    %67 = vector.load %arg8[%c56_73, %c0_74] : memref<64x128xf32, #tpu.memory_space<vmem>>, vector<8x128xf32>
    tpu.vector_store %arg8[%c56_73, %c0_74], %66 {strides = array<i32>} : memref<64x128xf32, #tpu.memory_space<vmem>>, vector<8x128xf32>,
    %68 = vector.extract_strided_slice %59 {offsets = [0, 1, 0], sizes = [1, 8, 8], strides = [1, 1, 1]} : vector<1x9x8xbf16> to vector<1x8x8xbf16>
    %69 = vector.shape_cast %68 : vector<1x8x8xbf16> to vector<8x8xbf16>
    %c56_75 = arith.constant 56 : index
    %c0_76 = arith.constant 0 : index
    %70 = vector.load %arg8[%c56_75, %c0_76] : memref<64x128xf32, #tpu.memory_space<vmem>>, vector<8x128xf32>
    %c2_77 = arith.constant 2 : index
    %c0_78 = arith.constant 0 : index
    %c0_79 = arith.constant 0 : index
    %71 = vector.load %arg5[%c2_77, %c0_78, %c0_79] : memref<3x8x128xbf16, #tpu.memory_space<vmem>>, vector<1x8x128xbf16>
    %72 = vector.shape_cast %71 : vector<1x8x128xbf16> to vector<8x128xbf16>
    %cst_80 = arith.constant dense<0.000000e+00> : vector<8x128xf32>
    %73 = tpu.matmul %69, %72, %cst_80 {dimension_numbers = #tpu.dot_dimension_numbers<[1], [0], [0], [1], [0, 0, 1, 1], [], []>} : vector<8x8xbf16>, vector<8x128xbf16>, vector<8x128xf32> -> vector<8x128xf32>
    %74 = arith.addf %70, %73 : vector<8x128xf32>
    %c56_81 = arith.constant 56 : index
    %c0_82 = arith.constant 0 : index
    %75 = vector.load %arg8[%c56_81, %c0_82] : memref<64x128xf32, #tpu.memory_space<vmem>>, vector<8x128xf32>
    tpu.vector_store %arg8[%c56_81, %c0_82], %74 {strides = array<i32>} : memref<64x128xf32, #tpu.memory_space<vmem>>, vector<8x128xf32>,
    %c0_83 = arith.constant 0 : index
    %c0_84 = arith.constant 0 : index
    %76 = vector.load %arg8[%c0_83, %c0_84] : memref<64x128xf32, #tpu.memory_space<vmem>>, vector<64x128xf32>
    %77 = vector.shape_cast %76 : vector<64x128xf32> to vector<8x8x128xf32>
    %c0_85 = arith.constant 0 : index
    %c0_86 = arith.constant 0 : index
    %c0_87 = arith.constant 0 : index
    %c0_88 = arith.constant 0 : index
    %78 = vector.load %arg7[%c0_85, %c0_86, %c0_87, %c0_88] : memref<1x8x8x128xf32, #tpu.memory_space<vmem>>, vector<1x8x8x128xf32>
    %79 = vector.shape_cast %78 : vector<1x8x8x128xf32> to vector<8x8x128xf32>
    %80 = vector.shape_cast %77 : vector<8x8x128xf32> to vector<1x8x8x128xf32>
    tpu.vector_store %arg7[%c0_85, %c0_86, %c0_87, %c0_88], %80 {strides = array<i32>} : memref<1x8x8x128xf32, #tpu.memory_space<vmem>>, vector<1x8x8x128xf32>,
    return
  }
  func.func @transform_0(%arg0: i32, %arg1: i32) -> (i32, i32, i32, i32, i32) {
    %c0_i32 = arith.constant 0 : i32
    %c0_i32_0 = arith.constant 0 : i32
    %c0_i32_1 = arith.constant 0 : i32
    %c0_i32_2 = arith.constant 0 : i32
    return %arg0, %arg1, %c0_i32, %c0_i32_0, %c0_i32_1 : i32, i32, i32, i32, i32
  }
  func.func @transform_1(%arg0: i32, %arg1: i32) -> (i32, i32, i32, i32, i32) {
    %c1_i32 = arith.constant 1 : i32
    %0 = arith.addi %arg1, %c1_i32 : i32
    %c8_i32 = arith.constant 8 : i32
    %1 = arith.muli %0, %c8_i32 : i32
    %c0_i32 = arith.constant 0 : i32
    %c0_i32_0 = arith.constant 0 : i32
    %c0_i32_1 = arith.constant 0 : i32
    %c0_i32_2 = arith.constant 0 : i32
    return %arg0, %1, %c0_i32, %c0_i32_0, %c0_i32_1 : i32, i32, i32, i32, i32
  }
  func.func @transform_2(%arg0: i32, %arg1: i32) -> (i32, i32, i32) {
    %c0_i32 = arith.constant 0 : i32
    %c0_i32_0 = arith.constant 0 : i32
    %c0_i32_1 = arith.constant 0 : i32
    %c0_i32_2 = arith.constant 0 : i32
    return %c0_i32, %c0_i32_0, %c0_i32_1 : i32, i32, i32
  }
  func.func @transform_3(%arg0: i32, %arg1: i32) -> (i32, i32, i32) {
    %c0_i32 = arith.constant 0 : i32
    %c0_i32_0 = arith.constant 0 : i32
    %c0_i32_1 = arith.constant 0 : i32
    %c0_i32_2 = arith.constant 0 : i32
    return %c0_i32, %c0_i32_0, %c0_i32_1 : i32, i32, i32
  }
  func.func @transform_4(%arg0: i32, %arg1: i32) -> (i32, i32) {
    %c0_i32 = arith.constant 0 : i32
    %c0_i32_0 = arith.constant 0 : i32
    %c0_i32_1 = arith.constant 0 : i32
    return %c0_i32, %c0_i32_0 : i32, i32
  }
  func.func @transform_5(%arg0: i32, %arg1: i32) -> (i32, i32, i32, i32) {
    %c0_i32 = arith.constant 0 : i32
    %c0_i32_0 = arith.constant 0 : i32
    %c0_i32_1 = arith.constant 0 : i32
    return %arg0, %arg1, %c0_i32, %c0_i32_0 : i32, i32, i32, i32
  }
}

</mosaic_0001>

<llo_original>
// kernel: conv_downsample.1
$region0: #{conv_downsample.1}
  #allocation0 [shape = 'u32[]', space=smem, size = 0x4, offset = 0x4, fixed_abs, tag = 'smem constant byte address 0x4 - core index']
  #allocation1 [shape = 'u32[144,128]{1,0:T(1,128)}', space=vmem, size = 0x12000, scoped, tag = 'internal scratch']
  #allocation2 [shape = 'f32[64,128]{1,0:T(8,128)}', space=vmem, size = 0x8000, scoped, tag = 'scratch operand']
  %s0 = inlined_call_operand.vmem [shape: bf16[2,9,2,9,8], index: 0, kind: input, shape index: {}, may-alias: {0,1}]
  %s1 = inlined_call_operand.vmem [shape: bf16[2,9,2,9,8], index: 1, kind: input, shape index: {}, may-alias: {0,1}]
  %s2 = inlined_call_operand.vmem [shape: bf16[3,8,128], index: 2, kind: input, shape index: {}]
  %s3 = inlined_call_operand.vmem [shape: bf16[3,8,128], index: 3, kind: input, shape index: {}]
  %s4 = inlined_call_operand.vmem [shape: f32[1,128], index: 4, kind: input, shape index: {}]
  %s5 = inlined_call_operand.vmem [shape: f32[2,8,8,128], index: 5, kind: output, shape index: {}]
  %s6 = sld [smem:[#allocation0]]
  $region53: #{conv_downsample.1} parent=0
    _
  %s8 = ssub.s32 1, %s6
  %s9 = scalar_select 0, %s8, %s6
  loop: start=0, step=1, limit=4
  $region2: #{conv_downsample.1} parent=0 // loop_pre_header
    _
  $region3: #{conv_downsample.1} parent=0 // loop_header
    %s11 = sphi 0, %s15
    %p12 = scmp.ge.s32.totalorder %s11, 4
    %s18 = sphi 0, %s30
    %s19 = sphi 0, %s26
    %s20 = sphi 0, %s18
    %s21 = sphi 0, %s19
    %s22 = sphi 0, %s20
    %s23 = sphi 0, %s21
    %s35 = sphi 0, %s37
    %s38 = sphi 0, %s35
    %s39 = sphi 0, %s38
    %s55 = sphi 0, %s39
    %s67 = sphi 0, %s69
    %s70 = sphi 0, %s67
    %s71 = sphi 0, %s70
    %s87 = sphi 0, %s71
    %s91 = sphi 0, %s91
    %s93 = sphi 0, %s91
    %s94 = sphi 0, %s93
    %s108 = sphi 0, %s94
    %s112 = sphi 0, %s112
    %s114 = sphi 0, %s112
    %s115 = sphi 0, %s114
    %s129 = sphi 0, %s115
    %s133 = sphi 0, %s133
    %s135 = sphi 0, %s133
    %s136 = sphi 0, %s135
    %s150 = sphi 0, %s136
    %s158 = sphi 0, %s160
    %s161 = sphi 0, %s158
    %s162 = sphi 0, %s161
    %s178 = sphi 0, %s162
  $region4: #{conv_downsample.1} parent=0 // loop_header_branch
    %14 = sbr.rel (%p12) target = $region8
  $region5: #{conv_downsample.1} parent=0 // loop_body
    %s16 = ssub.s32 %s11, 1
    %s17 = ssub.s32 %s11, 2
    %s24 = sadd.s32 1, %s19
    %p25 = scmp.ge.s32.totalorder %s24, 1
    %s26 = scalar_select %p25, 0, %s24
    %s27 = sadd.s32 1, %s18
    %s28 = scalar_select %p25, %s27, %s18
    %p29 = scmp.ge.s32.totalorder %s28, 2
    %s30 = scalar_select %p29, 0, %s28
    %s31 = ssub.s32 %s18, %s30
    %s32 = ssub.s32 %s19, %s26
    %s33 = sor.u32 %s31, %s32
    %p34 = scmp.eq.s32.totalorder %s33, 0
    %s36 = sadd.s32 %s35, 1
    %s37 = scalar_select %p34, %s35, %s36
    %p40 = pneg %p34
    %p41 = scmp.eq.s32.totalorder %s11, 1
    %p42 = por %p40, %p41
    %p43 = scmp.ne.s32.totalorder %s35, %s38
    %p44 = scmp.eq.s32.totalorder %s11, 0
    %p45 = por %p43, %p44
    %p46 = scmp.ne.s32.totalorder %s35, %s38
    %p47 = scmp.eq.s32.totalorder %s16, 1
    %p48 = por %p46, %p47
    %p49 = scmp.ne.s32.totalorder %s38, %s39
    %p50 = scmp.eq.s32.totalorder %s16, 0
    %p51 = por %p49, %p50
    %p52 = scmp.ne.s32.totalorder %s38, %s39
    %p53 = scmp.eq.s32.totalorder %s17, 1
    %p54 = por %p52, %p53
    %p56 = scmp.ne.s32.totalorder %s39, %s55
    %p57 = scmp.eq.s32.totalorder %s17, 0
    %p58 = por %p56, %p57
    %s59 = sadd.s32 %s19, 1
    %s60 = smul.u32 %s59, 8
    %s61 = sadd.s32 %s26, 1
    %s62 = smul.u32 %s61, 8
    %s63 = ssub.s32 %s18, %s30
    %s64 = ssub.s32 %s60, %s62
    %s65 = sor.u32 %s63, %s64
    %p66 = scmp.eq.s32.totalorder %s65, 0
    %s68 = sadd.s32 %s67, 1
    %s69 = scalar_select %p66, %s67, %s68
    %p72 = pneg %p66
    %p73 = scmp.eq.s32.totalorder %s11, 1
    %p74 = por %p72, %p73
    %p75 = scmp.ne.s32.totalorder %s67, %s70
    %p76 = scmp.eq.s32.totalorder %s11, 0
    %p77 = por %p75, %p76
    %p78 = scmp.ne.s32.totalorder %s67, %s70
    %p79 = scmp.eq.s32.totalorder %s16, 1
    %p80 = por %p78, %p79
    %p81 = scmp.ne.s32.totalorder %s70, %s71
    %p82 = scmp.eq.s32.totalorder %s16, 0
    %p83 = por %p81, %p82
    %p84 = scmp.ne.s32.totalorder %s70, %s71
    %p85 = scmp.eq.s32.totalorder %s17, 1
    %p86 = por %p84, %p85
    %p88 = scmp.ne.s32.totalorder %s71, %s87
    %p89 = scmp.eq.s32.totalorder %s17, 0
    %p90 = por %p88, %p89
    %s92 = sadd.s32 %s91, 1
    %p95 = scmp.eq.s32.totalorder %s11, 1
    %p96 = scmp.ne.s32.totalorder %s91, %s93
    %p97 = scmp.eq.s32.totalorder %s11, 0
    %p98 = por %p96, %p97
    %p99 = scmp.ne.s32.totalorder %s91, %s93
    %p100 = scmp.eq.s32.totalorder %s16, 1
    %p101 = por %p99, %p100
    %p102 = scmp.ne.s32.totalorder %s93, %s94
    %p103 = scmp.eq.s32.totalorder %s16, 0
    %p104 = por %p102, %p103
    %p105 = scmp.ne.s32.totalorder %s93, %s94
    %p106 = scmp.eq.s32.totalorder %s17, 1
    %p107 = por %p105, %p106
    %p109 = scmp.ne.s32.totalorder %s94, %s108
    %p110 = scmp.eq.s32.totalorder %s17, 0
    %p111 = por %p109, %p110
    %s113 = sadd.s32 %s112, 1
    %p116 = scmp.eq.s32.totalorder %s11, 1
    %p117 = scmp.ne.s32.totalorder %s112, %s114
    %p118 = scmp.eq.s32.totalorder %s11, 0
    %p119 = por %p117, %p118
    %p120 = scmp.ne.s32.totalorder %s112, %s114
    %p121 = scmp.eq.s32.totalorder %s16, 1
    %p122 = por %p120, %p121
    %p123 = scmp.ne.s32.totalorder %s114, %s115
    %p124 = scmp.eq.s32.totalorder %s16, 0
    %p125 = por %p123, %p124
    %p126 = scmp.ne.s32.totalorder %s114, %s115
    %p127 = scmp.eq.s32.totalorder %s17, 1
    %p128 = por %p126, %p127
    %p130 = scmp.ne.s32.totalorder %s115, %s129
    %p131 = scmp.eq.s32.totalorder %s17, 0
    %p132 = por %p130, %p131
    %s134 = sadd.s32 %s133, 1
    %p137 = scmp.eq.s32.totalorder %s11, 1
    %p138 = scmp.ne.s32.totalorder %s133, %s135
    %p139 = scmp.eq.s32.totalorder %s11, 0
    %p140 = por %p138, %p139
    %p141 = scmp.ne.s32.totalorder %s133, %s135
    %p142 = scmp.eq.s32.totalorder %s16, 1
    %p143 = por %p141, %p142
    %p144 = scmp.ne.s32.totalorder %s135, %s136
    %p145 = scmp.eq.s32.totalorder %s16, 0
    %p146 = por %p144, %p145
    %p147 = scmp.ne.s32.totalorder %s135, %s136
    %p148 = scmp.eq.s32.totalorder %s17, 1
    %p149 = por %p147, %p148
    %p151 = scmp.ne.s32.totalorder %s136, %s150
    %p152 = scmp.eq.s32.totalorder %s17, 0
    %p153 = por %p151, %p152
    %s154 = ssub.s32 %s18, %s30
    %s155 = ssub.s32 %s19, %s26
    %s156 = sor.u32 %s154, %s155
    %p157 = scmp.eq.s32.totalorder %s156, 0
    %s159 = sadd.s32 %s158, 1
    %s160 = scalar_select %p157, %s158, %s159
    %p163 = pneg %p157
    %p164 = scmp.eq.s32.totalorder %s11, 1
    %p165 = por %p163, %p164
    %p166 = scmp.ne.s32.totalorder %s158, %s161
    %p167 = scmp.eq.s32.totalorder %s11, 0
    %p168 = por %p166, %p167
    %p169 = scmp.ne.s32.totalorder %s158, %s161
    %p170 = scmp.eq.s32.totalorder %s16, 1
    %p171 = por %p169, %p170
    %p172 = scmp.ne.s32.totalorder %s161, %s162
    %p173 = scmp.eq.s32.totalorder %s16, 0
    %p174 = por %p172, %p173
    %p175 = scmp.ne.s32.totalorder %s161, %s162
    %p176 = scmp.eq.s32.totalorder %s17, 1
    %p177 = por %p175, %p176
    %p179 = scmp.ne.s32.totalorder %s162, %s178
    %p180 = scmp.eq.s32.totalorder %s17, 0
    %p181 = por %p179, %p180
    %p182 = scmp.le.s32.totalorder 1, %s11
    %p183 = scmp.lt.s32.totalorder %s11, 3
    %p184 = pnand %p182, %p183
    %p185 = pneg %p184
    // Predicated region
    $region9: #{conv_downsample.1} parent=5 // pred_check
      _
    $region10: #{conv_downsample.1} parent=5 // pred_check_branch
      %187 = sbr.rel (%p184) target = $region12
    $region11: #{conv_downsample.1} parent=5 // pred_region
      %s188 = ssub.s32 %s11, 1
      // Predicated region
      $region13: #{conv_downsample.1} parent=11 // pred_check
        %p189 = pneg %p104
      $region14: #{conv_downsample.1} parent=11 // pred_check_branch
        %191 = sbr.rel (%p189) target = $region16
      $region15: #{conv_downsample.1} parent=11 // pred_region
        _
      $region16: #{conv_downsample.1} parent=11 // pred_fallthru
        _
      // Predicated region
      $region17: #{conv_downsample.1} parent=11 // pred_check
        %p192 = pneg %p125
      $region18: #{conv_downsample.1} parent=11 // pred_check_branch
        %194 = sbr.rel (%p192) target = $region20
      $region19: #{conv_downsample.1} parent=11 // pred_region
        _
      $region20: #{conv_downsample.1} parent=11 // pred_fallthru
        _
      // Predicated region
      $region21: #{conv_downsample.1} parent=11 // pred_check
        %p195 = pneg %p146
      $region22: #{conv_downsample.1} parent=11 // pred_check_branch
        %197 = sbr.rel (%p195) target = $region24
      $region23: #{conv_downsample.1} parent=11 // pred_region
        _
      $region24: #{conv_downsample.1} parent=11 // pred_fallthru
        _
    $region12: #{conv_downsample.1} parent=5 // pred_fallthru
      _
    %p198 = scmp.lt.s32.totalorder %s11, 2
    // Predicated region
    $region25: #{conv_downsample.1} parent=5 // pred_check
      %p199 = pneg %p198
    $region26: #{conv_downsample.1} parent=5 // pred_check_branch
      %201 = sbr.rel (%p199) target = $region28
    $region27: #{conv_downsample.1} parent=5 // pred_region
      // Predicated region
      $region29: #{conv_downsample.1} parent=27 // pred_check
        %p202 = pneg %p45
      $region30: #{conv_downsample.1} parent=27 // pred_check_branch
        %204 = sbr.rel (%p202) target = $region32
      $region31: #{conv_downsample.1} parent=27 // pred_region
        %s205 = smul.u32 8, %s19
        %s206 = ssub.s32 9, %s205
        %p207 = scmp.lt.s32.totalorder %s206, 8
        %s208 = scalar_select %p207, %s206, 8
        %s209 = smul.u32 64, %s208
        %s210 = smul.u32 %s209, 2
        %s211 = smul.u32 %s210, 2
        %p212 = scmp.lt.s32.totalorder %s18, 1
        %s213 = scalar_select %p212, %s18, 1
        %p214 = scmp.lt.s32.totalorder %s205, 8
        %s215 = scalar_select %p214, %s205, 8
        %s216 = smul.addr %s215, 4
        %s217 = smul.addr %s213, 36
        %s218 = sadd.s32 %s216, %s217
        %s219 = smul.addr %s218, 4
        %s220 = scalar_lea.vmem %s0, %s219
        %s221 = smul.u32 8, %s19
        %s222 = ssub.s32 9, %s221
        %p223 = scmp.lt.s32.totalorder %s222, 8
        %s224 = scalar_select %p223, %s222, 8
        %s225 = smul.u32 64, %s224
        %s226 = smul.u32 %s225, 2
        %s227 = smul.u32 %s226, 2
      $region32: #{conv_downsample.1} parent=27 // pred_fallthru
        _
      // Predicated region
      $region33: #{conv_downsample.1} parent=27 // pred_check
        %p228 = pneg %p77
      $region34: #{conv_downsample.1} parent=27 // pred_check_branch
        %230 = sbr.rel (%p228) target = $region36
      $region35: #{conv_downsample.1} parent=27 // pred_region
        %s231 = sadd.s32 %s19, 1
        %s232 = smul.u32 %s231, 8
        %p233 = scmp.lt.s32.totalorder %s18, 1
        %s234 = scalar_select %p233, %s18, 1
        %p235 = scmp.lt.s32.totalorder %s232, 8
        %s236 = scalar_select %p235, %s232, 8
        %s237 = smul.addr %s236, 4
        %s238 = smul.addr %s234, 36
        %s239 = sadd.s32 %s237, %s238
        %s240 = smul.addr %s239, 4
        %s241 = scalar_lea.vmem %s1, %s240
        %s242 = sadd.s32 %s19, 1
        %s243 = smul.u32 %s242, 8
      $region36: #{conv_downsample.1} parent=27 // pred_fallthru
        _
    $region28: #{conv_downsample.1} parent=5 // pred_fallthru
      _
    %p244 = scmp.le.s32.totalorder 1, %s11
    %p245 = scmp.lt.s32.totalorder %s11, 3
    %p246 = pnand %p244, %p245
    %p247 = pneg %p246
    // Predicated region
    $region37: #{conv_downsample.1} parent=5 // pred_check
      _
    $region38: #{conv_downsample.1} parent=5 // pred_check_branch
      %249 = sbr.rel (%p246) target = $region40
    $region39: #{conv_downsample.1} parent=5 // pred_region
      %s250 = ssub.s32 %s11, 1
      %s251 = smul.u32 8, %s21
      %s252 = ssub.s32 9, %s251
      %p253 = scmp.lt.s32.totalorder %s252, 8
      %s254 = scalar_select %p253, %s252, 8
      %s255 = smul.u32 64, %s254
      %s256 = smul.u32 %s255, 2
      %s257 = smul.u32 %s256, 2
      %p258 = scmp.lt.s32.totalorder %s20, 1
      %s259 = scalar_select %p258, %s20, 1
      %p260 = scmp.lt.s32.totalorder %s251, 8
      %s261 = scalar_select %p260, %s251, 8
      %s262 = smul.addr %s261, 4
      %s263 = smul.addr %s259, 36
      %s264 = sadd.s32 %s262, %s263
      %s265 = smul.addr %s264, 4
      %s266 = scalar_lea.vmem %s0, %s265
      %p267 = pneg %p51
      %p268 = pneg %p48
      %s269 = sadd.s32 %s21, 1
      %s270 = smul.u32 %s269, 8
      %p271 = scmp.lt.s32.totalorder %s20, 1
      %s272 = scalar_select %p271, %s20, 1
      %p273 = scmp.lt.s32.totalorder %s270, 8
      %s274 = scalar_select %p273, %s270, 8
      %s275 = smul.addr %s274, 4
      %s276 = smul.addr %s272, 36
      %s277 = sadd.s32 %s275, %s276
      %s278 = smul.addr %s277, 4
      %s279 = scalar_lea.vmem %s1, %s278
      %p280 = pneg %p83
      %p281 = pneg %p80
      %p282 = pneg %p104
      %p283 = pneg %p101
      %p284 = pneg %p125
      %p285 = pneg %p122
      %p286 = pneg %p146
      %p287 = pneg %p143
      %p288 = pneg %p174
      %p289 = pneg %p171
      %s290 = smul.u32 8, %s21
      %p291 = scmp.lt.s32.totalorder %s20, 1
      %s292 = scalar_select %p291, %s20, 1
      %p293 = scmp.lt.s32.totalorder %s290, 7
      %s294 = scalar_select %p293, %s290, 7
      %s295 = smul.addr %s292, 8
      %s296 = sadd.s32 %s294, %s295
      %s297 = smul.addr %s296, 8
      %s298 = scalar_lea.vmem %s5, %s297
      %s299 = smul.u32 8, %s21
      %s300 = ssub.s32 9, %s299
      %p301 = scmp.lt.s32.totalorder %s300, 8
      %s302 = scalar_select %p301, %s300, 8
      %s303 = smul.u32 64, %s302
      %s304 = smul.u32 %s303, 2
      %s305 = smul.u32 %s304, 2
      %p306 = scmp.lt.s32.totalorder %s20, 1
      %s307 = scalar_select %p306, %s20, 1
      %p308 = scmp.lt.s32.totalorder %s299, 8
      %s309 = scalar_select %p308, %s299, 8
      %s310 = smul.addr %s309, 4
      %s311 = smul.addr %s307, 36
      %s312 = sadd.s32 %s310, %s311
      %s313 = smul.addr %s312, 4
      %s314 = scalar_lea.vmem %s0, %s313
      %s315 = smul.u32 8, %s21
      %s316 = ssub.s32 9, %s315
      %p317 = scmp.lt.s32.totalorder %s316, 8
      %s318 = scalar_select %p317, %s316, 8
      %s319 = smul.u32 64, %s318
      %s320 = smul.u32 %s319, 2
      %s321 = smul.u32 %s320, 2
      %s322 = sadd.s32 %s21, 1
      %s323 = smul.u32 %s322, 8
      %p324 = scmp.lt.s32.totalorder %s20, 1
      %s325 = scalar_select %p324, %s20, 1
      %p326 = scmp.lt.s32.totalorder %s323, 8
      %s327 = scalar_select %p326, %s323, 8
      %s328 = smul.addr %s327, 4
      %s329 = smul.addr %s325, 36
      %s330 = sadd.s32 %s328, %s329
      %s331 = smul.addr %s330, 4
      %s332 = scalar_lea.vmem %s1, %s331
      %s333 = sadd.s32 %s21, 1
      %s334 = smul.u32 %s333, 8
      %s335 = smul.u32 8, %s21
      %p336 = scmp.lt.s32.totalorder %s20, 1
      %s337 = scalar_select %p336, %s20, 1
      %p338 = scmp.lt.s32.totalorder %s335, 7
      %s339 = scalar_select %p338, %s335, 7
      %s340 = smul.addr %s337, 8
      %s341 = sadd.s32 %s339, %s340
      %s342 = smul.addr %s341, 8
      %s343 = scalar_lea.vmem %s5, %s342
      %s344 = smul.u32 8, %s21
      %v346 = vld [vmem:[%s4] sm:$0x1]
      %v348 = vlaneseq
      %v349 = vshrl.u32 %v348, 7
      %v350 = vsub.s32 0, %v349
      %v351 = vrot.slane %v346, %v350
      %353 = vst [vmem:[#allocation2] sm:$0xff] %v351
      %354 = vst [vmem:[#allocation2 + $0x8] sm:$0xff] %v351
      %355 = vst [vmem:[#allocation2 + $0x10] sm:$0xff] %v351
      %356 = vst [vmem:[#allocation2 + $0x18] sm:$0xff] %v351
      %357 = vst [vmem:[#allocation2 + $0x20] sm:$0xff] %v351
      %358 = vst [vmem:[#allocation2 + $0x28] sm:$0xff] %v351
      %359 = vst [vmem:[#allocation2 + $0x30] sm:$0xff] %v351
      %360 = vst [vmem:[#allocation2 + $0x38] sm:$0xff] %v351
      %v361 = vld [vmem:[%s314] sm:$0xf]
      %v362 = vld [vmem:[%s314 + $0x4] sm:$0x1]
      %v363 = vld [vmem:[%s314 + $0x10] sm:$0xf]
      %v364 = vld [vmem:[%s314 + $0x14] sm:$0x1]
      %v365 = vld [vmem:[%s314 + $0x20] sm:$0xf]
      %v366 = vld [vmem:[%s314 + $0x24] sm:$0x1]
      %v367 = vld [vmem:[%s314 + $0x30] sm:$0xf]
      %v368 = vld [vmem:[%s314 + $0x34] sm:$0x1]
      %v369 = vld [vmem:[%s314 + $0x40] sm:$0xf]
      %v370 = vld [vmem:[%s314 + $0x44] sm:$0x1]
      %v371 = vld [vmem:[%s314 + $0x50] sm:$0xf]
      %v372 = vld [vmem:[%s314 + $0x54] sm:$0x1]
      %v373 = vld [vmem:[%s314 + $0x60] sm:$0xf]
      %v374 = vld [vmem:[%s314 + $0x64] sm:$0x1]
      %v375 = vld [vmem:[%s314 + $0x70] sm:$0xf]
      %v376 = vld [vmem:[%s314 + $0x74] sm:$0x1]
      %v377 = vld [vmem:[#allocation2] sm:$0xff]
      %v378 = vld [vmem:[#allocation2 + $0x8] sm:$0xff]
      %v379 = vld [vmem:[#allocation2 + $0x10] sm:$0xff]
      %v380 = vld [vmem:[#allocation2 + $0x18] sm:$0xff]
      %v381 = vld [vmem:[#allocation2 + $0x20] sm:$0xff]
      %v382 = vld [vmem:[#allocation2 + $0x28] sm:$0xff]
      %v383 = vld [vmem:[#allocation2 + $0x30] sm:$0xff]
      %v384 = vld [vmem:[#allocation2 + $0x38] sm:$0xff]
      %v385 = vld [vmem:[%s2] sm:$0xf]
      %v394 = vunpack.c.l.b16 %v361
      %v395 = vunpack.c.l.b16 %v363
      %v396 = vunpack.c.l.b16 %v365
      %v397 = vunpack.c.l.b16 %v367
      %v398 = vunpack.c.l.b16 %v369
      %v399 = vunpack.c.l.b16 %v371
      %v400 = vunpack.c.l.b16 %v373
      %v401 = vunpack.c.l.b16 %v375
      %v402 = vpack.c.b16 %v395, %v394
      %v403 = vpack.c.b16 %v397, %v396
      %v404 = vpack.c.b16 %v399, %v398
      %v405 = vpack.c.b16 %v401, %v400
      %vm406 = vcmask 64512
      %v408 = vsel %vm406, %v402, 0
      %v411 = vsel %vm406, %v403, 0
      %v414 = vsel %vm406, %v404, 0
      %v417 = vsel %vm406, %v405, 0
      %vm419 = vcmask 1043456
      %v421 = vsel %vm419, %v385, 0
      %423 = vmatprep.subr.bf16.mxu0 0
      %424 = vmatpush1.bf16.msra.mxu0 %v421
      %425 = vmatprep.subr.bf16.mxu0 0
      %426 = vmatpush1.bf16.msra.mxu0 0
      %427 = vmatprep.subr.bf16.mxu0 0
      %428 = vmatpush1.bf16.msra.mxu0 0
      %429 = vmatprep.subr.bf16.mxu0 0
      %430 = vmatpush1.bf16.msra.mxu0 0
      %431 = vmatprep.subr.bf16.mxu0 0
      %432 = vmatpush1.bf16.msra.mxu0 0
      %433 = vmatprep.subr.bf16.mxu0 0
      %434 = vmatpush1.bf16.msra.mxu0 0
      %435 = vmatprep.subr.bf16.mxu0 0
      %436 = vmatpush1.bf16.msra.mxu0 0
      %437 = vmatprep.subr.bf16.mxu0 0
      %438 = vmatpush1.bf16.msra.mxu0 0
      %439 = vmatprep.subr.bf16.mxu0 0
      %440 = vmatpush1.bf16.msra.mxu0 0
      %441 = vmatprep.subr.bf16.mxu0 0
      %442 = vmatpush1.bf16.msra.mxu0 0
      %443 = vmatprep.subr.bf16.mxu0 0
      %444 = vmatpush1.bf16.msra.mxu0 0
      %445 = vmatprep.subr.bf16.mxu0 0
      %446 = vmatpush1.bf16.msra.mxu0 0
      %447 = vmatprep.subr.bf16.mxu0 0
      %448 = vmatpush1.bf16.msra.mxu0 0
      %449 = vmatprep.subr.bf16.mxu0 0
      %450 = vmatpush1.bf16.msra.mxu0 0
      %451 = vmatprep.subr.bf16.mxu0 0
      %452 = vmatpush1.bf16.msra.mxu0 0
      %453 = vmatprep.subr.bf16.mxu0 0
      %454 = vmatpush1.bf16.msra.mxu0 0
      %455 = vmatprep.mubr.bf16.mxu0 0
      %456 = vmatmul.mubr.bf16.gmra.mrb[0].mxu0 %v408
      %v457 = vpop.f32.mrb[0].mxu0
      %v458 = vadd.f32 0.0, %v457
      %v459 = vpop.f32.mrb[0].mxu0
      %v460 = vpop.f32.mrb[0].mxu0
      %v461 = vadd.f32 0.0, %v460
      %v462 = vpop.f32.mrb[0].mxu0
      %463 = vmatprep.mubr.bf16.mxu0 0
      %464 = vmatmul.mubr.bf16.gmra.mrb[0].mxu0 %v411
      %v465 = vpop.f32.mrb[0].mxu0
      %v466 = vadd.f32 0.0, %v465
      %v467 = vpop.f32.mrb[0].mxu0
      %v468 = vpop.f32.mrb[0].mxu0
      %v469 = vadd.f32 0.0, %v468
      %v470 = vpop.f32.mrb[0].mxu0
      %471 = vmatprep.mubr.bf16.mxu0 0
      %472 = vmatmul.mubr.bf16.gmra.mrb[0].mxu0 %v414
      %v473 = vpop.f32.mrb[0].mxu0
      %v474 = vadd.f32 0.0, %v473
      %v475 = vpop.f32.mrb[0].mxu0
      %v476 = vpop.f32.mrb[0].mxu0
      %v477 = vadd.f32 0.0, %v476
      %v478 = vpop.f32.mrb[0].mxu0
      %479 = vmatprep.mubr.bf16.mxu0 0
      %480 = vmatmul.mubr.bf16.gmra.mrb[0].mxu0 %v417
      %v481 = vpop.f32.mrb[0].mxu0
      %v482 = vadd.f32 0.0, %v481
      %v483 = vpop.f32.mrb[0].mxu0
      %v484 = vpop.f32.mrb[0].mxu0
      %v485 = vadd.f32 0.0, %v484
      %v486 = vpop.f32.mrb[0].mxu0
      %487 = vdwg.mxu0
      %v488 = vadd.f32 %v377, %v458
      %v489 = vadd.f32 %v378, %v461
      %v490 = vadd.f32 %v379, %v466
      %v491 = vadd.f32 %v380, %v469
      %v492 = vadd.f32 %v381, %v474
      %v493 = vadd.f32 %v382, %v477
      %v494 = vadd.f32 %v383, %v482
      %v495 = vadd.f32 %v384, %v485
      %496 = vst [vmem:[#allocation2] sm:$0xff] %v488
      %497 = vst [vmem:[#allocation2 + $0x8] sm:$0xff] %v489
      %498 = vst [vmem:[#allocation2 + $0x10] sm:$0xff] %v490
      %499 = vst [vmem:[#allocation2 + $0x18] sm:$0xff] %v491
      %500 = vst [vmem:[#allocation2 + $0x20] sm:$0xff] %v492
      %501 = vst [vmem:[#allocation2 + $0x28] sm:$0xff] %v493
      %502 = vst [vmem:[#allocation2 + $0x30] sm:$0xff] %v494
      %503 = vst [vmem:[#allocation2 + $0x38] sm:$0xff] %v495
      %vm504 = vsmask.f32 3328
      %vm505 = vsmask.f32 7440
      %vm506 = vmor %vm504, %vm505
      %v508 = vshrl.u32 %v361, 16
      %v510 = vrot.slane %v508, 4
      %v511 = vshll.u32 %v361, 16
      %v513 = vrot.slane %v511, 5
      %v514 = vor.u32 %v510, %v513
      %v515 = vrot.slane %v514, 4
      %v517 = vshll.u32 %v362, 16
      %v519 = vrot.slane %v517, 5
      %v520 = vsel %vm506, %v515, %v519
      %v522 = vshrl.u32 %v363, 16
      %v524 = vrot.slane %v522, 4
      %v525 = vshll.u32 %v363, 16
      %v527 = vrot.slane %v525, 5
      %v528 = vor.u32 %v524, %v527
      %v529 = vrot.slane %v528, 4
      %v531 = vshll.u32 %v364, 16
      %v533 = vrot.slane %v531, 5
      %v534 = vsel %vm506, %v529, %v533
      %v536 = vshrl.u32 %v365, 16
      %v538 = vrot.slane %v536, 4
      %v539 = vshll.u32 %v365, 16
      %v541 = vrot.slane %v539, 5
      %v542 = vor.u32 %v538, %v541
      %v543 = vrot.slane %v542, 4
      %v545 = vshll.u32 %v366, 16
      %v547 = vrot.slane %v545, 5
      %v548 = vsel %vm506, %v543, %v547
      %v550 = vshrl.u32 %v367, 16
      %v552 = vrot.slane %v550, 4
      %v553 = vshll.u32 %v367, 16
      %v555 = vrot.slane %v553, 5
      %v556 = vor.u32 %v552, %v555
      %v557 = vrot.slane %v556, 4
      %v559 = vshll.u32 %v368, 16
      %v561 = vrot.slane %v559, 5
      %v562 = vsel %vm506, %v557, %v561
      %v564 = vshrl.u32 %v369, 16
      %v566 = vrot.slane %v564, 4
      %v567 = vshll.u32 %v369, 16
      %v569 = vrot.slane %v567, 5
      %v570 = vor.u32 %v566, %v569
      %v571 = vrot.slane %v570, 4
      %v573 = vshll.u32 %v370, 16
      %v575 = vrot.slane %v573, 5
      %v576 = vsel %vm506, %v571, %v575
      %v578 = vshrl.u32 %v371, 16
      %v580 = vrot.slane %v578, 4
      %v581 = vshll.u32 %v371, 16
      %v583 = vrot.slane %v581, 5
      %v584 = vor.u32 %v580, %v583
      %v585 = vrot.slane %v584, 4
      %v587 = vshll.u32 %v372, 16
      %v589 = vrot.slane %v587, 5
      %v590 = vsel %vm506, %v585, %v589
      %v592 = vshrl.u32 %v373, 16
      %v594 = vrot.slane %v592, 4
      %v595 = vshll.u32 %v373, 16
      %v597 = vrot.slane %v595, 5
      %v598 = vor.u32 %v594, %v597
      %v599 = vrot.slane %v598, 4
      %v601 = vshll.u32 %v374, 16
      %v603 = vrot.slane %v601, 5
      %v604 = vsel %vm506, %v599, %v603
      %v606 = vshrl.u32 %v375, 16
      %v608 = vrot.slane %v606, 4
      %v609 = vshll.u32 %v375, 16
      %v611 = vrot.slane %v609, 5
      %v612 = vor.u32 %v608, %v611
      %v613 = vrot.slane %v612, 4
      %v615 = vshll.u32 %v376, 16
      %v617 = vrot.slane %v615, 5
      %v618 = vsel %vm506, %v613, %v617
      %v619 = vld [vmem:[#allocation2] sm:$0xff]
      %v620 = vld [vmem:[#allocation2 + $0x8] sm:$0xff]
      %v621 = vld [vmem:[#allocation2 + $0x10] sm:$0xff]
      %v622 = vld [vmem:[#allocation2 + $0x18] sm:$0xff]
      %v623 = vld [vmem:[#allocation2 + $0x20] sm:$0xff]
      %v624 = vld [vmem:[#allocation2 + $0x28] sm:$0xff]
      %v625 = vld [vmem:[#allocation2 + $0x30] sm:$0xff]
      %v626 = vld [vmem:[#allocation2 + $0x38] sm:$0xff]
      %v627 = vld [vmem:[%s3] sm:$0xf]
      %v628 = vunpack.c.l.b16 %v520
      %v629 = vunpack.c.l.b16 %v534
      %v630 = vunpack.c.l.b16 %v548
      %v631 = vunpack.c.l.b16 %v562
      %v632 = vunpack.c.l.b16 %v576
      %v633 = vunpack.c.l.b16 %v590
      %v634 = vunpack.c.l.b16 %v604
      %v635 = vunpack.c.l.b16 %v618
      %v636 = vpack.c.b16 %v629, %v628
      %v637 = vpack.c.b16 %v631, %v630
      %v638 = vpack.c.b16 %v633, %v632
      %v639 = vpack.c.b16 %v635, %v634
      %v641 = vsel %vm406, %v636, 0
      %v644 = vsel %vm406, %v637, 0
      %v647 = vsel %vm406, %v638, 0
      %v650 = vsel %vm406, %v639, 0
      %v653 = vsel %vm419, %v627, 0
      %655 = vmatprep.subr.bf16.mxu0 0
      %656 = vmatpush1.bf16.msra.mxu0 %v653
      %657 = vmatprep.subr.bf16.mxu0 0
      %658 = vmatpush1.bf16.msra.mxu0 0
      %659 = vmatprep.subr.bf16.mxu0 0
      %660 = vmatpush1.bf16.msra.mxu0 0
      %661 = vmatprep.subr.bf16.mxu0 0
      %662 = vmatpush1.bf16.msra.mxu0 0
      %663 = vmatprep.subr.bf16.mxu0 0
      %664 = vmatpush1.bf16.msra.mxu0 0
      %665 = vmatprep.subr.bf16.mxu0 0
      %666 = vmatpush1.bf16.msra.mxu0 0
      %667 = vmatprep.subr.bf16.mxu0 0
      %668 = vmatpush1.bf16.msra.mxu0 0
      %669 = vmatprep.subr.bf16.mxu0 0
      %670 = vmatpush1.bf16.msra.mxu0 0
      %671 = vmatprep.subr.bf16.mxu0 0
      %672 = vmatpush1.bf16.msra.mxu0 0
      %673 = vmatprep.subr.bf16.mxu0 0
      %674 = vmatpush1.bf16.msra.mxu0 0
      %675 = vmatprep.subr.bf16.mxu0 0
      %676 = vmatpush1.bf16.msra.mxu0 0
      %677 = vmatprep.subr.bf16.mxu0 0
      %678 = vmatpush1.bf16.msra.mxu0 0
      %679 = vmatprep.subr.bf16.mxu0 0
      %680 = vmatpush1.bf16.msra.mxu0 0
      %681 = vmatprep.subr.bf16.mxu0 0
      %682 = vmatpush1.bf16.msra.mxu0 0
      %683 = vmatprep.subr.bf16.mxu0 0
      %684 = vmatpush1.bf16.msra.mxu0 0
      %685 = vmatprep.subr.bf16.mxu0 0
      %686 = vmatpush1.bf16.msra.mxu0 0
      %687 = vmatprep.mubr.bf16.mxu0 0
      %688 = vmatmul.mubr.bf16.gmra.mrb[0].mxu0 %v641
      %v689 = vpop.f32.mrb[0].mxu0
      %v690 = vadd.f32 0.0, %v689
      %v691 = vpop.f32.mrb[0].mxu0
      %v692 = vpop.f32.mrb[0].mxu0
      %v693 = vadd.f32 0.0, %v692
      %v694 = vpop.f32.mrb[0].mxu0
      %695 = vmatprep.mubr.bf16.mxu0 0
      %696 = vmatmul.mubr.bf16.gmra.mrb[0].mxu0 %v644
      %v697 = vpop.f32.mrb[0].mxu0
      %v698 = vadd.f32 0.0, %v697
      %v699 = vpop.f32.mrb[0].mxu0
      %v700 = vpop.f32.mrb[0].mxu0
      %v701 = vadd.f32 0.0, %v700
      %v702 = vpop.f32.mrb[0].mxu0
      %703 = vmatprep.mubr.bf16.mxu0 0
      %704 = vmatmul.mubr.bf16.gmra.mrb[0].mxu0 %v647
      %v705 = vpop.f32.mrb[0].mxu0
      %v706 = vadd.f32 0.0, %v705
      %v707 = vpop.f32.mrb[0].mxu0
      %v708 = vpop.f32.mrb[0].mxu0
      %v709 = vadd.f32 0.0, %v708
      %v710 = vpop.f32.mrb[0].mxu0
      %711 = vmatprep.mubr.bf16.mxu0 0
      %712 = vmatmul.mubr.bf16.gmra.mrb[0].mxu0 %v650
      %v713 = vpop.f32.mrb[0].mxu0
      %v714 = vadd.f32 0.0, %v713
      %v715 = vpop.f32.mrb[0].mxu0
      %v716 = vpop.f32.mrb[0].mxu0
      %v717 = vadd.f32 0.0, %v716
      %v718 = vpop.f32.mrb[0].mxu0
      %719 = vdwg.mxu0
      %v720 = vadd.f32 %v619, %v690
      %v721 = vadd.f32 %v620, %v693
      %v722 = vadd.f32 %v621, %v698
      %v723 = vadd.f32 %v622, %v701
      %v724 = vadd.f32 %v623, %v706
      %v725 = vadd.f32 %v624, %v709
      %v726 = vadd.f32 %v625, %v714
      %v727 = vadd.f32 %v626, %v717
      %728 = vst [vmem:[#allocation2] sm:$0xff] %v720
      %729 = vst [vmem:[#allocation2 + $0x8] sm:$0xff] %v721
      %730 = vst [vmem:[#allocation2 + $0x10] sm:$0xff] %v722
      %731 = vst [vmem:[#allocation2 + $0x18] sm:$0xff] %v723
      %732 = vst [vmem:[#allocation2 + $0x20] sm:$0xff] %v724
      %733 = vst [vmem:[#allocation2 + $0x28] sm:$0xff] %v725
      %734 = vst [vmem:[#allocation2 + $0x30] sm:$0xff] %v726
      %735 = vst [vmem:[#allocation2 + $0x38] sm:$0xff] %v727
      %s736 = scalar_lea.vmem %s314, 8
      %v737 = vld [vmem:[%s736] sm:$0xf]
      %v738 = vld [vmem:[%s736 + $0x4] sm:$0x1]
      %v739 = vld [vmem:[%s736 + $0x10] sm:$0xf]
      %v740 = vld [vmem:[%s736 + $0x14] sm:$0x1]
      %v741 = vld [vmem:[%s736 + $0x20] sm:$0xf]
      %v742 = vld [vmem:[%s736 + $0x24] sm:$0x1]
      %v743 = vld [vmem:[%s736 + $0x30] sm:$0xf]
      %v744 = vld [vmem:[%s736 + $0x34] sm:$0x1]
      %v745 = vld [vmem:[%s736 + $0x40] sm:$0xf]
      %v746 = vld [vmem:[%s736 + $0x44] sm:$0x1]
      %v747 = vld [vmem:[%s736 + $0x50] sm:$0xf]
      %v748 = vld [vmem:[%s736 + $0x54] sm:$0x1]
      %v749 = vld [vmem:[%s736 + $0x60] sm:$0xf]
      %v750 = vld [vmem:[%s736 + $0x64] sm:$0x1]
      %v751 = vld [vmem:[%s736 + $0x70] sm:$0xf]
      %v752 = vld [vmem:[%s736 + $0x74] sm:$0x1]
      %v753 = vld [vmem:[#allocation2] sm:$0xff]
      %v754 = vld [vmem:[#allocation2 + $0x8] sm:$0xff]
      %v755 = vld [vmem:[#allocation2 + $0x10] sm:$0xff]
      %v756 = vld [vmem:[#allocation2 + $0x18] sm:$0xff]
      %v757 = vld [vmem:[#allocation2 + $0x20] sm:$0xff]
      %v758 = vld [vmem:[#allocation2 + $0x28] sm:$0xff]
      %v759 = vld [vmem:[#allocation2 + $0x30] sm:$0xff]
      %v760 = vld [vmem:[#allocation2 + $0x38] sm:$0xff]
      %s761 = scalar_lea.vmem %s2, 4
      %v762 = vld [vmem:[%s761] sm:$0xf]
      %v771 = vunpack.c.l.b16 %v737
      %v772 = vunpack.c.l.b16 %v739
      %v773 = vunpack.c.l.b16 %v741
      %v774 = vunpack.c.l.b16 %v743
      %v775 = vunpack.c.l.b16 %v745
      %v776 = vunpack.c.l.b16 %v747
      %v777 = vunpack.c.l.b16 %v749
      %v778 = vunpack.c.l.b16 %v751
      %v779 = vpack.c.b16 %v772, %v771
      %v780 = vpack.c.b16 %v774, %v773
      %v781 = vpack.c.b16 %v776, %v775
      %v782 = vpack.c.b16 %v778, %v777
      %v784 = vsel %vm406, %v779, 0
      %v787 = vsel %vm406, %v780, 0
      %v790 = vsel %vm406, %v781, 0
      %v793 = vsel %vm406, %v782, 0
      %v796 = vsel %vm419, %v762, 0
      %798 = vmatprep.subr.bf16.mxu0 0
      %799 = vmatpush1.bf16.msra.mxu0 %v796
      %800 = vmatprep.subr.bf16.mxu0 0
      %801 = vmatpush1.bf16.msra.mxu0 0
      %802 = vmatprep.subr.bf16.mxu0 0
      %803 = vmatpush1.bf16.msra.mxu0 0
      %804 = vmatprep.subr.bf16.mxu0 0
      %805 = vmatpush1.bf16.msra.mxu0 0
      %806 = vmatprep.subr.bf16.mxu0 0
      %807 = vmatpush1.bf16.msra.mxu0 0
      %808 = vmatprep.subr.bf16.mxu0 0
      %809 = vmatpush1.bf16.msra.mxu0 0
      %810 = vmatprep.subr.bf16.mxu0 0
      %811 = vmatpush1.bf16.msra.mxu0 0
      %812 = vmatprep.subr.bf16.mxu0 0
      %813 = vmatpush1.bf16.msra.mxu0 0
      %814 = vmatprep.subr.bf16.mxu0 0
      %815 = vmatpush1.bf16.msra.mxu0 0
      %816 = vmatprep.subr.bf16.mxu0 0
      %817 = vmatpush1.bf16.msra.mxu0 0
      %818 = vmatprep.subr.bf16.mxu0 0
      %819 = vmatpush1.bf16.msra.mxu0 0
      %820 = vmatprep.subr.bf16.mxu0 0
      %821 = vmatpush1.bf16.msra.mxu0 0
      %822 = vmatprep.subr.bf16.mxu0 0
      %823 = vmatpush1.bf16.msra.mxu0 0
      %824 = vmatprep.subr.bf16.mxu0 0
      %825 = vmatpush1.bf16.msra.mxu0 0
      %826 = vmatprep.subr.bf16.mxu0 0
      %827 = vmatpush1.bf16.msra.mxu0 0
      %828 = vmatprep.subr.bf16.mxu0 0
      %829 = vmatpush1.bf16.msra.mxu0 0
      %830 = vmatprep.mubr.bf16.mxu0 0
      %831 = vmatmul.mubr.bf16.gmra.mrb[0].mxu0 %v784
      %v832 = vpop.f32.mrb[0].mxu0
      %v833 = vadd.f32 0.0, %v832
      %v834 = vpop.f32.mrb[0].mxu0
      %v835 = vpop.f32.mrb[0].mxu0
      %v836 = vadd.f32 0.0, %v835
      %v837 = vpop.f32.mrb[0].mxu0
      %838 = vmatprep.mubr.bf16.mxu0 0
      %839 = vmatmul.mubr.bf16.gmra.mrb[0].mxu0 %v787
      %v840 = vpop.f32.mrb[0].mxu0
      %v841 = vadd.f32 0.0, %v840
      %v842 = vpop.f32.mrb[0].mxu0
      %v843 = vpop.f32.mrb[0].mxu0
      %v844 = vadd.f32 0.0, %v843
      %v845 = vpop.f32.mrb[0].mxu0
      %846 = vmatprep.mubr.bf16.mxu0 0
      %847 = vmatmul.mubr.bf16.gmra.mrb[0].mxu0 %v790
      %v848 = vpop.f32.mrb[0].mxu0
      %v849 = vadd.f32 0.0, %v848
      %v850 = vpop.f32.mrb[0].mxu0
      %v851 = vpop.f32.mrb[0].mxu0
      %v852 = vadd.f32 0.0, %v851
      %v853 = vpop.f32.mrb[0].mxu0
      %854 = vmatprep.mubr.bf16.mxu0 0
      %855 = vmatmul.mubr.bf16.gmra.mrb[0].mxu0 %v793
      %v856 = vpop.f32.mrb[0].mxu0
      %v857 = vadd.f32 0.0, %v856
      %v858 = vpop.f32.mrb[0].mxu0
      %v859 = vpop.f32.mrb[0].mxu0
      %v860 = vadd.f32 0.0, %v859
      %v861 = vpop.f32.mrb[0].mxu0
      %862 = vdwg.mxu0
      %v863 = vadd.f32 %v753, %v833
      %v864 = vadd.f32 %v754, %v836
      %v865 = vadd.f32 %v755, %v841
      %v866 = vadd.f32 %v756, %v844
      %v867 = vadd.f32 %v757, %v849
      %v868 = vadd.f32 %v758, %v852
      %v869 = vadd.f32 %v759, %v857
      %v870 = vadd.f32 %v760, %v860
      %871 = vst [vmem:[#allocation2] sm:$0xff] %v863
      %872 = vst [vmem:[#allocation2 + $0x8] sm:$0xff] %v864
      %873 = vst [vmem:[#allocation2 + $0x10] sm:$0xff] %v865
      %874 = vst [vmem:[#allocation2 + $0x18] sm:$0xff] %v866
      %875 = vst [vmem:[#allocation2 + $0x20] sm:$0xff] %v867
      %876 = vst [vmem:[#allocation2 + $0x28] sm:$0xff] %v868
      %877 = vst [vmem:[#allocation2 + $0x30] sm:$0xff] %v869
      %878 = vst [vmem:[#allocation2 + $0x38] sm:$0xff] %v870
      %v880 = vshrl.u32 %v737, 16
      %v882 = vrot.slane %v880, 4
      %v883 = vshll.u32 %v737, 16
      %v885 = vrot.slane %v883, 5
      %v886 = vor.u32 %v882, %v885
      %v887 = vrot.slane %v886, 4
      %v889 = vshll.u32 %v738, 16
      %v891 = vrot.slane %v889, 5
      %v892 = vsel %vm506, %v887, %v891
      %v894 = vshrl.u32 %v739, 16
      %v896 = vrot.slane %v894, 4
      %v897 = vshll.u32 %v739, 16
      %v899 = vrot.slane %v897, 5
      %v900 = vor.u32 %v896, %v899
      %v901 = vrot.slane %v900, 4
      %v903 = vshll.u32 %v740, 16
      %v905 = vrot.slane %v903, 5
      %v906 = vsel %vm506, %v901, %v905
      %v908 = vshrl.u32 %v741, 16
      %v910 = vrot.slane %v908, 4
      %v911 = vshll.u32 %v741, 16
      %v913 = vrot.slane %v911, 5
      %v914 = vor.u32 %v910, %v913
      %v915 = vrot.slane %v914, 4
      %v917 = vshll.u32 %v742, 16
      %v919 = vrot.slane %v917, 5
      %v920 = vsel %vm506, %v915, %v919
      %v922 = vshrl.u32 %v743, 16
      %v924 = vrot.slane %v922, 4
      %v925 = vshll.u32 %v743, 16
      %v927 = vrot.slane %v925, 5
      %v928 = vor.u32 %v924, %v927
      %v929 = vrot.slane %v928, 4
      %v931 = vshll.u32 %v744, 16
      %v933 = vrot.slane %v931, 5
      %v934 = vsel %vm506, %v929, %v933
      %v936 = vshrl.u32 %v745, 16
      %v938 = vrot.slane %v936, 4
      %v939 = vshll.u32 %v745, 16
      %v941 = vrot.slane %v939, 5
      %v942 = vor.u32 %v938, %v941
      %v943 = vrot.slane %v942, 4
      %v945 = vshll.u32 %v746, 16
      %v947 = vrot.slane %v945, 5
      %v948 = vsel %vm506, %v943, %v947
      %v950 = vshrl.u32 %v747, 16
      %v952 = vrot.slane %v950, 4
      %v953 = vshll.u32 %v747, 16
      %v955 = vrot.slane %v953, 5
      %v956 = vor.u32 %v952, %v955
      %v957 = vrot.slane %v956, 4
      %v959 = vshll.u32 %v748, 16
      %v961 = vrot.slane %v959, 5
      %v962 = vsel %vm506, %v957, %v961
      %v964 = vshrl.u32 %v749, 16
      %v966 = vrot.slane %v964, 4
      %v967 = vshll.u32 %v749, 16
      %v969 = vrot.slane %v967, 5
      %v970 = vor.u32 %v966, %v969
      %v971 = vrot.slane %v970, 4
      %v973 = vshll.u32 %v750, 16
      %v975 = vrot.slane %v973, 5
      %v976 = vsel %vm506, %v971, %v975
      %v978 = vshrl.u32 %v751, 16
      %v980 = vrot.slane %v978, 4
      %v981 = vshll.u32 %v751, 16
      %v983 = vrot.slane %v981, 5
      %v984 = vor.u32 %v980, %v983
      %v985 = vrot.slane %v984, 4
      %v987 = vshll.u32 %v752, 16
      %v989 = vrot.slane %v987, 5
      %v990 = vsel %vm506, %v985, %v989
      %v991 = vld [vmem:[#allocation2] sm:$0xff]
      %v992 = vld [vmem:[#allocation2 + $0x8] sm:$0xff]
      %v993 = vld [vmem:[#allocation2 + $0x10] sm:$0xff]
      %v994 = vld [vmem:[#allocation2 + $0x18] sm:$0xff]
      %v995 = vld [vmem:[#allocation2 + $0x20] sm:$0xff]
      %v996 = vld [vmem:[#allocation2 + $0x28] sm:$0xff]
      %v997 = vld [vmem:[#allocation2 + $0x30] sm:$0xff]
      %v998 = vld [vmem:[#allocation2 + $0x38] sm:$0xff]
      %s999 = scalar_lea.vmem %s3, 4
      %v1000 = vld [vmem:[%s999] sm:$0xf]
      %v1001 = vunpack.c.l.b16 %v892
      %v1002 = vunpack.c.l.b16 %v906
      %v1003 = vunpack.c.l.b16 %v920
      %v1004 = vunpack.c.l.b16 %v934
      %v1005 = vunpack.c.l.b16 %v948
      %v1006 = vunpack.c.l.b16 %v962
      %v1007 = vunpack.c.l.b16 %v976
      %v1008 = vunpack.c.l.b16 %v990
      %v1009 = vpack.c.b16 %v1002, %v1001
      %v1010 = vpack.c.b16 %v1004, %v1003
      %v1011 = vpack.c.b16 %v1006, %v1005
      %v1012 = vpack.c.b16 %v1008, %v1007
      %v1014 = vsel %vm406, %v1009, 0
      %v1017 = vsel %vm406, %v1010, 0
      %v1020 = vsel %vm406, %v1011, 0
      %v1023 = vsel %vm406, %v1012, 0
      %v1026 = vsel %vm419, %v1000, 0
      %1028 = vmatprep.subr.bf16.mxu0 0
      %1029 = vmatpush1.bf16.msra.mxu0 %v1026
      %1030 = vmatprep.subr.bf16.mxu0 0
      %1031 = vmatpush1.bf16.msra.mxu0 0
      %1032 = vmatprep.subr.bf16.mxu0 0
      %1033 = vmatpush1.bf16.msra.mxu0 0
      %1034 = vmatprep.subr.bf16.mxu0 0
      %1035 = vmatpush1.bf16.msra.mxu0 0
      %1036 = vmatprep.subr.bf16.mxu0 0
      %1037 = vmatpush1.bf16.msra.mxu0 0
      %1038 = vmatprep.subr.bf16.mxu0 0
      %1039 = vmatpush1.bf16.msra.mxu0 0
      %1040 = vmatprep.subr.bf16.mxu0 0
      %1041 = vmatpush1.bf16.msra.mxu0 0
      %1042 = vmatprep.subr.bf16.mxu0 0
      %1043 = vmatpush1.bf16.msra.mxu0 0
      %1044 = vmatprep.subr.bf16.mxu0 0
      %1045 = vmatpush1.bf16.msra.mxu0 0
      %1046 = vmatprep.subr.bf16.mxu0 0
      %1047 = vmatpush1.bf16.msra.mxu0 0
      %1048 = vmatprep.subr.bf16.mxu0 0
      %1049 = vmatpush1.bf16.msra.mxu0 0
      %1050 = vmatprep.subr.bf16.mxu0 0
      %1051 = vmatpush1.bf16.msra.mxu0 0
      %1052 = vmatprep.subr.bf16.mxu0 0
      %1053 = vmatpush1.bf16.msra.mxu0 0
      %1054 = vmatprep.subr.bf16.mxu0 0
      %1055 = vmatpush1.bf16.msra.mxu0 0
      %1056 = vmatprep.subr.bf16.mxu0 0
      %1057 = vmatpush1.bf16.msra.mxu0 0
      %1058 = vmatprep.subr.bf16.mxu0 0
      %1059 = vmatpush1.bf16.msra.mxu0 0
      %1060 = vmatprep.mubr.bf16.mxu0 0
      %1061 = vmatmul.mubr.bf16.gmra.mrb[0].mxu0 %v1014
      %v1062 = vpop.f32.mrb[0].mxu0
      %v1063 = vadd.f32 0.0, %v1062
      %v1064 = vpop.f32.mrb[0].mxu0
      %v1065 = vpop.f32.mrb[0].mxu0
      %v1066 = vadd.f32 0.0, %v1065
      %v1067 = vpop.f32.mrb[0].mxu0
      %1068 = vmatprep.mubr.bf16.mxu0 0
      %1069 = vmatmul.mubr.bf16.gmra.mrb[0].mxu0 %v1017
      %v1070 = vpop.f32.mrb[0].mxu0
      %v1071 = vadd.f32 0.0, %v1070
      %v1072 = vpop.f32.mrb[0].mxu0
      %v1073 = vpop.f32.mrb[0].mxu0
      %v1074 = vadd.f32 0.0, %v1073
      %v1075 = vpop.f32.mrb[0].mxu0
      %1076 = vmatprep.mubr.bf16.mxu0 0
      %1077 = vmatmul.mubr.bf16.gmra.mrb[0].mxu0 %v1020
      %v1078 = vpop.f32.mrb[0].mxu0
      %v1079 = vadd.f32 0.0, %v1078
      %v1080 = vpop.f32.mrb[0].mxu0
      %v1081 = vpop.f32.mrb[0].mxu0
      %v1082 = vadd.f32 0.0, %v1081
      %v1083 = vpop.f32.mrb[0].mxu0
      %1084 = vmatprep.mubr.bf16.mxu0 0
      %1085 = vmatmul.mubr.bf16.gmra.mrb[0].mxu0 %v1023
      %v1086 = vpop.f32.mrb[0].mxu0
      %v1087 = vadd.f32 0.0, %v1086
      %v1088 = vpop.f32.mrb[0].mxu0
      %v1089 = vpop.f32.mrb[0].mxu0
      %v1090 = vadd.f32 0.0, %v1089
      %v1091 = vpop.f32.mrb[0].mxu0
      %1092 = vdwg.mxu0
      %v1093 = vadd.f32 %v991, %v1063
      %v1094 = vadd.f32 %v992, %v1066
      %v1095 = vadd.f32 %v993, %v1071
      %v1096 = vadd.f32 %v994, %v1074
      %v1097 = vadd.f32 %v995, %v1079
      %v1098 = vadd.f32 %v996, %v1082
      %v1099 = vadd.f32 %v997, %v1087
      %v1100 = vadd.f32 %v998, %v1090
      %1101 = vst [vmem:[#allocation2] sm:$0xff] %v1093
      %1102 = vst [vmem:[#allocation2 + $0x8] sm:$0xff] %v1094
      %1103 = vst [vmem:[#allocation2 + $0x10] sm:$0xff] %v1095
      %1104 = vst [vmem:[#allocation2 + $0x18] sm:$0xff] %v1096
      %1105 = vst [vmem:[#allocation2 + $0x20] sm:$0xff] %v1097
      %1106 = vst [vmem:[#allocation2 + $0x28] sm:$0xff] %v1098
      %1107 = vst [vmem:[#allocation2 + $0x30] sm:$0xff] %v1099
      %1108 = vst [vmem:[#allocation2 + $0x38] sm:$0xff] %v1100
      %s1109 = scalar_lea.vmem %s314, 16
      %v1110 = vld [vmem:[%s1109] sm:$0xf]
      %v1111 = vld [vmem:[%s1109 + $0x4] sm:$0x1]
      %v1112 = vld [vmem:[%s1109 + $0x10] sm:$0xf]
      %v1113 = vld [vmem:[%s1109 + $0x14] sm:$0x1]
      %v1114 = vld [vmem:[%s1109 + $0x20] sm:$0xf]
      %v1115 = vld [vmem:[%s1109 + $0x24] sm:$0x1]
      %v1116 = vld [vmem:[%s1109 + $0x30] sm:$0xf]
      %v1117 = vld [vmem:[%s1109 + $0x34] sm:$0x1]
      %v1118 = vld [vmem:[%s1109 + $0x40] sm:$0xf]
      %v1119 = vld [vmem:[%s1109 + $0x44] sm:$0x1]
      %v1120 = vld [vmem:[%s1109 + $0x50] sm:$0xf]
      %v1121 = vld [vmem:[%s1109 + $0x54] sm:$0x1]
      %v1122 = vld [vmem:[%s1109 + $0x60] sm:$0xf]
      %v1123 = vld [vmem:[%s1109 + $0x64] sm:$0x1]
      %v1124 = vld [vmem:[#allocation2] sm:$0xff]
      %v1125 = vld [vmem:[#allocation2 + $0x8] sm:$0xff]
      %v1126 = vld [vmem:[#allocation2 + $0x10] sm:$0xff]
      %v1127 = vld [vmem:[#allocation2 + $0x18] sm:$0xff]
      %v1128 = vld [vmem:[#allocation2 + $0x20] sm:$0xff]
      %v1129 = vld [vmem:[#allocation2 + $0x28] sm:$0xff]
      %v1130 = vld [vmem:[#allocation2 + $0x30] sm:$0xff]
      %s1131 = scalar_lea.vmem %s2, 8
      %v1132 = vld [vmem:[%s1131] sm:$0xf]
      %v1140 = vunpack.c.l.b16 %v1110
      %v1141 = vunpack.c.l.b16 %v1112
      %v1142 = vunpack.c.l.b16 %v1114
      %v1143 = vunpack.c.l.b16 %v1116
      %v1144 = vunpack.c.l.b16 %v1118
      %v1145 = vunpack.c.l.b16 %v1120
      %v1146 = vunpack.c.l.b16 %v1122
      %v1147 = vpack.c.b16 %v1141, %v1140
      %v1148 = vpack.c.b16 %v1143, %v1142
      %v1149 = vpack.c.b16 %v1145, %v1144
      %v1150 = vpack.c.b16 %v1146, %v1146
      %v1152 = vsel %vm406, %v1147, 0
      %v1155 = vsel %vm406, %v1148, 0
      %v1158 = vsel %vm406, %v1149, 0
      %v1161 = vsel %vm406, %v1150, 0
      %v1164 = vsel %vm419, %v1132, 0
      %1166 = vmatprep.subr.bf16.mxu0 0
      %1167 = vmatpush1.bf16.msra.mxu0 %v1164
      %1168 = vmatprep.subr.bf16.mxu0 0
      %1169 = vmatpush1.bf16.msra.mxu0 0
      %1170 = vmatprep.subr.bf16.mxu0 0
      %1171 = vmatpush1.bf16.msra.mxu0 0
      %1172 = vmatprep.subr.bf16.mxu0 0
      %1173 = vmatpush1.bf16.msra.mxu0 0
      %1174 = vmatprep.subr.bf16.mxu0 0
      %1175 = vmatpush1.bf16.msra.mxu0 0
      %1176 = vmatprep.subr.bf16.mxu0 0
      %1177 = vmatpush1.bf16.msra.mxu0 0
      %1178 = vmatprep.subr.bf16.mxu0 0
      %1179 = vmatpush1.bf16.msra.mxu0 0
      %1180 = vmatprep.subr.bf16.mxu0 0
      %1181 = vmatpush1.bf16.msra.mxu0 0
      %1182 = vmatprep.subr.bf16.mxu0 0
      %1183 = vmatpush1.bf16.msra.mxu0 0
      %1184 = vmatprep.subr.bf16.mxu0 0
      %1185 = vmatpush1.bf16.msra.mxu0 0
      %1186 = vmatprep.subr.bf16.mxu0 0
      %1187 = vmatpush1.bf16.msra.mxu0 0
      %1188 = vmatprep.subr.bf16.mxu0 0
      %1189 = vmatpush1.bf16.msra.mxu0 0
      %1190 = vmatprep.subr.bf16.mxu0 0
      %1191 = vmatpush1.bf16.msra.mxu0 0
      %1192 = vmatprep.subr.bf16.mxu0 0
      %1193 = vmatpush1.bf16.msra.mxu0 0
      %1194 = vmatprep.subr.bf16.mxu0 0
      %1195 = vmatpush1.bf16.msra.mxu0 0
      %1196 = vmatprep.subr.bf16.mxu0 0
      %1197 = vmatpush1.bf16.msra.mxu0 0
      %1198 = vmatprep.mubr.bf16.mxu0 0
      %1199 = vmatmul.mubr.bf16.gmra.mrb[0].mxu0 %v1152
      %v1200 = vpop.f32.mrb[0].mxu0
      %v1201 = vadd.f32 0.0, %v1200
      %v1202 = vpop.f32.mrb[0].mxu0
      %v1203 = vpop.f32.mrb[0].mxu0
      %v1204 = vadd.f32 0.0, %v1203
      %v1205 = vpop.f32.mrb[0].mxu0
      %1206 = vmatprep.mubr.bf16.mxu0 0
      %1207 = vmatmul.mubr.bf16.gmra.mrb[0].mxu0 %v1155
      %v1208 = vpop.f32.mrb[0].mxu0
      %v1209 = vadd.f32 0.0, %v1208
      %v1210 = vpop.f32.mrb[0].mxu0
      %v1211 = vpop.f32.mrb[0].mxu0
      %v1212 = vadd.f32 0.0, %v1211
      %v1213 = vpop.f32.mrb[0].mxu0
      %1214 = vmatprep.mubr.bf16.mxu0 0
      %1215 = vmatmul.mubr.bf16.gmra.mrb[0].mxu0 %v1158
      %v1216 = vpop.f32.mrb[0].mxu0
      %v1217 = vadd.f32 0.0, %v1216
      %v1218 = vpop.f32.mrb[0].mxu0
      %v1219 = vpop.f32.mrb[0].mxu0
      %v1220 = vadd.f32 0.0, %v1219
      %v1221 = vpop.f32.mrb[0].mxu0
      %1222 = vmatprep.mubr.bf16.mxu0 0
      %1223 = vmatmul.mubr.bf16.gmra.mrb[0].mxu0 %v1161
      %v1224 = vpop.f32.mrb[0].mxu0
      %v1225 = vadd.f32 0.0, %v1224
      %v1226 = vpop.f32.mrb[0].mxu0
      %v1227 = vpop.f32.mrb[0].mxu0
      %v1228 = vpop.f32.mrb[0].mxu0
      %1229 = vdwg.mxu0
      %v1230 = vadd.f32 %v1124, %v1201
      %v1231 = vadd.f32 %v1125, %v1204
      %v1232 = vadd.f32 %v1126, %v1209
      %v1233 = vadd.f32 %v1127, %v1212
      %v1234 = vadd.f32 %v1128, %v1217
      %v1235 = vadd.f32 %v1129, %v1220
      %v1236 = vadd.f32 %v1130, %v1225
      %1237 = vst [vmem:[#allocation2] sm:$0xff] %v1230
      %1238 = vst [vmem:[#allocation2 + $0x8] sm:$0xff] %v1231
      %1239 = vst [vmem:[#allocation2 + $0x10] sm:$0xff] %v1232
      %1240 = vst [vmem:[#allocation2 + $0x18] sm:$0xff] %v1233
      %1241 = vst [vmem:[#allocation2 + $0x20] sm:$0xff] %v1234
      %1242 = vst [vmem:[#allocation2 + $0x28] sm:$0xff] %v1235
      %1243 = vst [vmem:[#allocation2 + $0x30] sm:$0xff] %v1236
      %v1245 = vshrl.u32 %v1110, 16
      %v1247 = vrot.slane %v1245, 4
      %v1248 = vshll.u32 %v1110, 16
      %v1250 = vrot.slane %v1248, 5
      %v1251 = vor.u32 %v1247, %v1250
      %v1252 = vrot.slane %v1251, 4
      %v1254 = vshll.u32 %v1111, 16
      %v1256 = vrot.slane %v1254, 5
      %v1257 = vsel %vm506, %v1252, %v1256
      %v1259 = vshrl.u32 %v1112, 16
      %v1261 = vrot.slane %v1259, 4
      %v1262 = vshll.u32 %v1112, 16
      %v1264 = vrot.slane %v1262, 5
      %v1265 = vor.u32 %v1261, %v1264
      %v1266 = vrot.slane %v1265, 4
      %v1268 = vshll.u32 %v1113, 16
      %v1270 = vrot.slane %v1268, 5
      %v1271 = vsel %vm506, %v1266, %v1270
      %v1273 = vshrl.u32 %v1114, 16
      %v1275 = vrot.slane %v1273, 4
      %v1276 = vshll.u32 %v1114, 16
      %v1278 = vrot.slane %v1276, 5
      %v1279 = vor.u32 %v1275, %v1278
      %v1280 = vrot.slane %v1279, 4
      %v1282 = vshll.u32 %v1115, 16
      %v1284 = vrot.slane %v1282, 5
      %v1285 = vsel %vm506, %v1280, %v1284
      %v1287 = vshrl.u32 %v1116, 16
      %v1289 = vrot.slane %v1287, 4
      %v1290 = vshll.u32 %v1116, 16
      %v1292 = vrot.slane %v1290, 5
      %v1293 = vor.u32 %v1289, %v1292
      %v1294 = vrot.slane %v1293, 4
      %v1296 = vshll.u32 %v1117, 16
      %v1298 = vrot.slane %v1296, 5
      %v1299 = vsel %vm506, %v1294, %v1298
      %v1301 = vshrl.u32 %v1118, 16
      %v1303 = vrot.slane %v1301, 4
      %v1304 = vshll.u32 %v1118, 16
      %v1306 = vrot.slane %v1304, 5
      %v1307 = vor.u32 %v1303, %v1306
      %v1308 = vrot.slane %v1307, 4
      %v1310 = vshll.u32 %v1119, 16
      %v1312 = vrot.slane %v1310, 5
      %v1313 = vsel %vm506, %v1308, %v1312
      %v1315 = vshrl.u32 %v1120, 16
      %v1317 = vrot.slane %v1315, 4
      %v1318 = vshll.u32 %v1120, 16
      %v1320 = vrot.slane %v1318, 5
      %v1321 = vor.u32 %v1317, %v1320
      %v1322 = vrot.slane %v1321, 4
      %v1324 = vshll.u32 %v1121, 16
      %v1326 = vrot.slane %v1324, 5
      %v1327 = vsel %vm506, %v1322, %v1326
      %v1329 = vshrl.u32 %v1122, 16
      %v1331 = vrot.slane %v1329, 4
      %v1332 = vshll.u32 %v1122, 16
      %v1334 = vrot.slane %v1332, 5
      %v1335 = vor.u32 %v1331, %v1334
      %v1336 = vrot.slane %v1335, 4
      %v1338 = vshll.u32 %v1123, 16
      %v1340 = vrot.slane %v1338, 5
      %v1341 = vsel %vm506, %v1336, %v1340
      %v1342 = vld [vmem:[#allocation2] sm:$0xff]
      %v1343 = vld [vmem:[#allocation2 + $0x8] sm:$0xff]
      %v1344 = vld [vmem:[#allocation2 + $0x10] sm:$0xff]
      %v1345 = vld [vmem:[#allocation2 + $0x18] sm:$0xff]
      %v1346 = vld [vmem:[#allocation2 + $0x20] sm:$0xff]
      %v1347 = vld [vmem:[#allocation2 + $0x28] sm:$0xff]
      %v1348 = vld [vmem:[#allocation2 + $0x30] sm:$0xff]
      %s1349 = scalar_lea.vmem %s3, 8
      %v1350 = vld [vmem:[%s1349] sm:$0xf]
      %v1351 = vunpack.c.l.b16 %v1257
      %v1352 = vunpack.c.l.b16 %v1271
      %v1353 = vunpack.c.l.b16 %v1285
      %v1354 = vunpack.c.l.b16 %v1299
      %v1355 = vunpack.c.l.b16 %v1313
      %v1356 = vunpack.c.l.b16 %v1327
      %v1357 = vunpack.c.l.b16 %v1341
      %v1358 = vpack.c.b16 %v1352, %v1351
      %v1359 = vpack.c.b16 %v1354, %v1353
      %v1360 = vpack.c.b16 %v1356, %v1355
      %v1361 = vpack.c.b16 %v1357, %v1357
      %v1363 = vsel %vm406, %v1358, 0
      %v1366 = vsel %vm406, %v1359, 0
      %v1369 = vsel %vm406, %v1360, 0
      %v1372 = vsel %vm406, %v1361, 0
      %v1375 = vsel %vm419, %v1350, 0
      %1377 = vmatprep.subr.bf16.mxu0 0
      %1378 = vmatpush1.bf16.msra.mxu0 %v1375
      %1379 = vmatprep.subr.bf16.mxu0 0
      %1380 = vmatpush1.bf16.msra.mxu0 0
      %1381 = vmatprep.subr.bf16.mxu0 0
      %1382 = vmatpush1.bf16.msra.mxu0 0
      %1383 = vmatprep.subr.bf16.mxu0 0
      %1384 = vmatpush1.bf16.msra.mxu0 0
      %1385 = vmatprep.subr.bf16.mxu0 0
      %1386 = vmatpush1.bf16.msra.mxu0 0
      %1387 = vmatprep.subr.bf16.mxu0 0
      %1388 = vmatpush1.bf16.msra.mxu0 0
      %1389 = vmatprep.subr.bf16.mxu0 0
      %1390 = vmatpush1.bf16.msra.mxu0 0
      %1391 = vmatprep.subr.bf16.mxu0 0
      %1392 = vmatpush1.bf16.msra.mxu0 0
      %1393 = vmatprep.subr.bf16.mxu0 0
      %1394 = vmatpush1.bf16.msra.mxu0 0
      %1395 = vmatprep.subr.bf16.mxu0 0
      %1396 = vmatpush1.bf16.msra.mxu0 0
      %1397 = vmatprep.subr.bf16.mxu0 0
      %1398 = vmatpush1.bf16.msra.mxu0 0
      %1399 = vmatprep.subr.bf16.mxu0 0
      %1400 = vmatpush1.bf16.msra.mxu0 0
      %1401 = vmatprep.subr.bf16.mxu0 0
      %1402 = vmatpush1.bf16.msra.mxu0 0
      %1403 = vmatprep.subr.bf16.mxu0 0
      %1404 = vmatpush1.bf16.msra.mxu0 0
      %1405 = vmatprep.subr.bf16.mxu0 0
      %1406 = vmatpush1.bf16.msra.mxu0 0
      %1407 = vmatprep.subr.bf16.mxu0 0
      %1408 = vmatpush1.bf16.msra.mxu0 0
      %1409 = vmatprep.mubr.bf16.mxu0 0
      %1410 = vmatmul.mubr.bf16.gmra.mrb[0].mxu0 %v1363
      %v1411 = vpop.f32.mrb[0].mxu0
      %v1412 = vadd.f32 0.0, %v1411
      %v1413 = vpop.f32.mrb[0].mxu0
      %v1414 = vpop.f32.mrb[0].mxu0
      %v1415 = vadd.f32 0.0, %v1414
      %v1416 = vpop.f32.mrb[0].mxu0
      %1417 = vmatprep.mubr.bf16.mxu0 0
      %1418 = vmatmul.mubr.bf16.gmra.mrb[0].mxu0 %v1366
      %v1419 = vpop.f32.mrb[0].mxu0
      %v1420 = vadd.f32 0.0, %v1419
      %v1421 = vpop.f32.mrb[0].mxu0
      %v1422 = vpop.f32.mrb[0].mxu0
      %v1423 = vadd.f32 0.0, %v1422
      %v1424 = vpop.f32.mrb[0].mxu0
      %1425 = vmatprep.mubr.bf16.mxu0 0
      %1426 = vmatmul.mubr.bf16.gmra.mrb[0].mxu0 %v1369
      %v1427 = vpop.f32.mrb[0].mxu0
      %v1428 = vadd.f32 0.0, %v1427
      %v1429 = vpop.f32.mrb[0].mxu0
      %v1430 = vpop.f32.mrb[0].mxu0
      %v1431 = vadd.f32 0.0, %v1430
      %v1432 = vpop.f32.mrb[0].mxu0
      %1433 = vmatprep.mubr.bf16.mxu0 0
      %1434 = vmatmul.mubr.bf16.gmra.mrb[0].mxu0 %v1372
      %v1435 = vpop.f32.mrb[0].mxu0
      %v1436 = vadd.f32 0.0, %v1435
      %v1437 = vpop.f32.mrb[0].mxu0
      %v1438 = vpop.f32.mrb[0].mxu0
      %v1439 = vpop.f32.mrb[0].mxu0
      %1440 = vdwg.mxu0
      %v1441 = vadd.f32 %v1342, %v1412
      %v1442 = vadd.f32 %v1343, %v1415
      %v1443 = vadd.f32 %v1344, %v1420
      %v1444 = vadd.f32 %v1345, %v1423
      %v1445 = vadd.f32 %v1346, %v1428
      %v1446 = vadd.f32 %v1347, %v1431
      %v1447 = vadd.f32 %v1348, %v1436
      %1448 = vst [vmem:[#allocation2] sm:$0xff] %v1441
      %1449 = vst [vmem:[#allocation2 + $0x8] sm:$0xff] %v1442
      %1450 = vst [vmem:[#allocation2 + $0x10] sm:$0xff] %v1443
      %1451 = vst [vmem:[#allocation2 + $0x18] sm:$0xff] %v1444
      %1452 = vst [vmem:[#allocation2 + $0x20] sm:$0xff] %v1445
      %1453 = vst [vmem:[#allocation2 + $0x28] sm:$0xff] %v1446
      %1454 = vst [vmem:[#allocation2 + $0x30] sm:$0xff] %v1447
      %v1455 = vld [vmem:[%s332] sm:$0xf]
      %v1456 = vld [vmem:[%s332 + $0x4] sm:$0x1]
      %v1457 = vld [vmem:[#allocation2 + $0x38] sm:$0xff]
      %v1458 = vld [vmem:[%s1131] sm:$0xf]
      %v1460 = vsel %vm406, %v1455, 0
      %v1463 = vsel %vm419, %v1458, 0
      %1465 = vmatprep.subr.bf16.mxu0 0
      %1466 = vmatpush1.bf16.msra.mxu0 %v1463
      %1467 = vmatprep.subr.bf16.mxu0 0
      %1468 = vmatpush1.bf16.msra.mxu0 0
      %1469 = vmatprep.subr.bf16.mxu0 0
      %1470 = vmatpush1.bf16.msra.mxu0 0
      %1471 = vmatprep.subr.bf16.mxu0 0
      %1472 = vmatpush1.bf16.msra.mxu0 0
      %1473 = vmatprep.subr.bf16.mxu0 0
      %1474 = vmatpush1.bf16.msra.mxu0 0
      %1475 = vmatprep.subr.bf16.mxu0 0
      %1476 = vmatpush1.bf16.msra.mxu0 0
      %1477 = vmatprep.subr.bf16.mxu0 0
      %1478 = vmatpush1.bf16.msra.mxu0 0
      %1479 = vmatprep.subr.bf16.mxu0 0
      %1480 = vmatpush1.bf16.msra.mxu0 0
      %1481 = vmatprep.subr.bf16.mxu0 0
      %1482 = vmatpush1.bf16.msra.mxu0 0
      %1483 = vmatprep.subr.bf16.mxu0 0
      %1484 = vmatpush1.bf16.msra.mxu0 0
      %1485 = vmatprep.subr.bf16.mxu0 0
      %1486 = vmatpush1.bf16.msra.mxu0 0
      %1487 = vmatprep.subr.bf16.mxu0 0
      %1488 = vmatpush1.bf16.msra.mxu0 0
      %1489 = vmatprep.subr.bf16.mxu0 0
      %1490 = vmatpush1.bf16.msra.mxu0 0
      %1491 = vmatprep.subr.bf16.mxu0 0
      %1492 = vmatpush1.bf16.msra.mxu0 0
      %1493 = vmatprep.subr.bf16.mxu0 0
      %1494 = vmatpush1.bf16.msra.mxu0 0
      %1495 = vmatprep.subr.bf16.mxu0 0
      %1496 = vmatpush1.bf16.msra.mxu0 0
      %1497 = vmatprep.mubr.bf16.mxu0 0
      %1498 = vmatmul.mubr.bf16.gmra.mrb[0].mxu0 %v1460
      %v1499 = vpop.f32.mrb[0].mxu0
      %v1500 = vadd.f32 0.0, %v1499
      %v1501 = vpop.f32.mrb[0].mxu0
      %v1502 = vpop.f32.mrb[0].mxu0
      %v1503 = vpop.f32.mrb[0].mxu0
      %1504 = vdwg.mxu0
      %v1505 = vadd.f32 %v1457, %v1500
      %1506 = vst [vmem:[#allocation2 + $0x38] sm:$0xff] %v1505
      %v1507 = vld [vmem:[#allocation2 + $0x38] sm:$0xff]
      %v1508 = vld [vmem:[%s1349] sm:$0xf]
      %v1511 = vunpack.c.l.b16 %v1455
      %v1512 = vunpack.c.l.b16 %v1456
      %v1513 = vpack.c.b16 %v1512, %v1511
      %v1515 = vshrl.u32 %v1513, 16
      %v1517 = vshll.u32 %v1513, 16
      %v1519 = vrot.slane %v1517, 1
      %v1520 = vor.u32 %v1515, %v1519
      %v1522 = vsel %vm406, %v1520, 0
      %v1525 = vsel %vm419, %v1508, 0
      %1527 = vmatprep.subr.bf16.mxu0 0
      %1528 = vmatpush1.bf16.msra.mxu0 %v1525
      %1529 = vmatprep.subr.bf16.mxu0 0
      %1530 = vmatpush1.bf16.msra.mxu0 0
      %1531 = vmatprep.subr.bf16.mxu0 0
      %1532 = vmatpush1.bf16.msra.mxu0 0
      %1533 = vmatprep.subr.bf16.mxu0 0
      %1534 = vmatpush1.bf16.msra.mxu0 0
      %1535 = vmatprep.subr.bf16.mxu0 0
      %1536 = vmatpush1.bf16.msra.mxu0 0
      %1537 = vmatprep.subr.bf16.mxu0 0
      %1538 = vmatpush1.bf16.msra.mxu0 0
      %1539 = vmatprep.subr.bf16.mxu0 0
      %1540 = vmatpush1.bf16.msra.mxu0 0
      %1541 = vmatprep.subr.bf16.mxu0 0
      %1542 = vmatpush1.bf16.msra.mxu0 0
      %1543 = vmatprep.subr.bf16.mxu0 0
      %1544 = vmatpush1.bf16.msra.mxu0 0
      %1545 = vmatprep.subr.bf16.mxu0 0
      %1546 = vmatpush1.bf16.msra.mxu0 0
      %1547 = vmatprep.subr.bf16.mxu0 0
      %1548 = vmatpush1.bf16.msra.mxu0 0
      %1549 = vmatprep.subr.bf16.mxu0 0
      %1550 = vmatpush1.bf16.msra.mxu0 0
      %1551 = vmatprep.subr.bf16.mxu0 0
      %1552 = vmatpush1.bf16.msra.mxu0 0
      %1553 = vmatprep.subr.bf16.mxu0 0
      %1554 = vmatpush1.bf16.msra.mxu0 0
      %1555 = vmatprep.subr.bf16.mxu0 0
      %1556 = vmatpush1.bf16.msra.mxu0 0
      %1557 = vmatprep.subr.bf16.mxu0 0
      %1558 = vmatpush1.bf16.msra.mxu0 0
      %1559 = vmatprep.mubr.bf16.mxu0 0
      %1560 = vmatmul.mubr.bf16.gmra.mrb[0].mxu0 %v1522
      %v1561 = vpop.f32.mrb[0].mxu0
      %v1562 = vadd.f32 0.0, %v1561
      %v1563 = vpop.f32.mrb[0].mxu0
      %v1564 = vpop.f32.mrb[0].mxu0
      %v1565 = vpop.f32.mrb[0].mxu0
      %1566 = vdwg.mxu0
      %v1567 = vadd.f32 %v1507, %v1562
      %1568 = vst [vmem:[#allocation2 + $0x38] sm:$0xff] %v1567
      %v1569 = vld [vmem:[#allocation2] sm:$0xff]
      %v1570 = vld [vmem:[#allocation2 + $0x8] sm:$0xff]
      %v1571 = vld [vmem:[#allocation2 + $0x10] sm:$0xff]
      %v1572 = vld [vmem:[#allocation2 + $0x18] sm:$0xff]
      %v1573 = vld [vmem:[#allocation2 + $0x20] sm:$0xff]
      %v1574 = vld [vmem:[#allocation2 + $0x28] sm:$0xff]
      %v1575 = vld [vmem:[#allocation2 + $0x30] sm:$0xff]
      %v1576 = vld [vmem:[#allocation2 + $0x38] sm:$0xff]
      %1577 = vst [vmem:[%s343] sm:$0xff] %v1569
      %1578 = vst [vmem:[%s343 + $0x8] sm:$0xff] %v1570
      %1579 = vst [vmem:[%s343 + $0x10] sm:$0xff] %v1571
      %1580 = vst [vmem:[%s343 + $0x18] sm:$0xff] %v1572
      %1581 = vst [vmem:[%s343 + $0x20] sm:$0xff] %v1573
      %1582 = vst [vmem:[%s343 + $0x28] sm:$0xff] %v1574
      %1583 = vst [vmem:[%s343 + $0x30] sm:$0xff] %v1575
      %1584 = vst [vmem:[%s343 + $0x38] sm:$0xff] %v1576
      %s1585 = smul.u32 8, %s21
      %p1586 = scmp.lt.s32.totalorder %s20, 1
      %s1587 = scalar_select %p1586, %s20, 1
      %p1588 = scmp.lt.s32.totalorder %s1585, 7
      %s1589 = scalar_select %p1588, %s1585, 7
      %s1590 = smul.addr %s1587, 8
      %s1591 = sadd.s32 %s1589, %s1590
      %s1592 = smul.addr %s1591, 8
      %s1593 = scalar_lea.vmem %s5, %s1592
      // Predicated region
      $region41: #{conv_downsample.1} parent=39 // pred_check
        %p1594 = pneg %p171
      $region42: #{conv_downsample.1} parent=39 // pred_check_branch
        %1596 = sbr.rel (%p1594) target = $region44
      $region43: #{conv_downsample.1} parent=39 // pred_region
        %s1597 = smul.u32 8, %s21
      $region44: #{conv_downsample.1} parent=39 // pred_fallthru
        _
    $region40: #{conv_downsample.1} parent=5 // pred_fallthru
      _
    %p1598 = scmp.le.s32.totalorder 2, %s11
    // Predicated region
    $region45: #{conv_downsample.1} parent=5 // pred_check
      %p1599 = pneg %p1598
    $region46: #{conv_downsample.1} parent=5 // pred_check_branch
      %1601 = sbr.rel (%p1599) target = $region48
    $region47: #{conv_downsample.1} parent=5 // pred_region
      %s1602 = ssub.s32 %s11, 2
      // Predicated region
      $region49: #{conv_downsample.1} parent=47 // pred_check
        %p1603 = pneg %p177
      $region50: #{conv_downsample.1} parent=47 // pred_check_branch
        %1605 = sbr.rel (%p1603) target = $region52
      $region51: #{conv_downsample.1} parent=47 // pred_region
        %s1606 = smul.u32 8, %s23
        %p1607 = scmp.lt.s32.totalorder %s22, 1
        %s1608 = scalar_select %p1607, %s22, 1
        %p1609 = scmp.lt.s32.totalorder %s1606, 7
        %s1610 = scalar_select %p1609, %s1606, 7
        %s1611 = smul.addr %s1608, 8
        %s1612 = sadd.s32 %s1610, %s1611
        %s1613 = smul.addr %s1612, 8
        %s1614 = scalar_lea.vmem %s5, %s1613
      $region52: #{conv_downsample.1} parent=47 // pred_fallthru
        _
    $region48: #{conv_downsample.1} parent=5 // pred_fallthru
      _
  $region6: #{conv_downsample.1} parent=0 // loop_footer
    %s15 = sadd.s32 1, %s11
  $region7: #{conv_downsample.1} parent=0 // loop_footer_branch
    %10 = sbr.rel target = $region3
  $region8: #{conv_downsample.1} parent=0 // loop_exit
    _

</llo_original>
